<compile_context>
chip_gen: v7x
topology: tpu7x:2x2x1
jax: 0.10.0
libtpu: 0.0.40
codegen_flags: <defaults>
</compile_context>

<pallas_src>
import functools

import jax
import jax.numpy as jnp
from jax.experimental import pallas as pl
from jax.experimental.pallas import tpu as pltpu


def rnn_agent_kernel(
    # per-timestep input + initial hidden state
    x_ref, h0_ref,
    # feature-layer MLP weights (pre-transposed to (in, out)) and biases
    w1, b1, w2, b2, w3, b3, w4, b4, w5, b5,
    # fused GRU weights: x-side / h-side slabs of shape (H, 4H) and bias (1, 4H)
    w_gx, w_gh, b_g,
    # head, zero-padded to 128 output lanes
    w_head, b_head,
    # outputs
    q_ref, feat_ref,
    # scratch: hidden-state carry across grid (time) steps
    h_scr,
):
    t = pl.program_id(0)

    @pl.when(t == 0)
    def _():
        h_scr[...] = h0_ref[...]

    def linear(v, w_r, b_r):
        return jnp.dot(v, w_r[...], preferred_element_type=jnp.float32) + b_r[...]

    # FeatureLayer MLP: 5 x (Linear -> ReLU)
    x = x_ref[0]
    x = jnp.maximum(linear(x, w1, b1), 0.0)
    x = jnp.maximum(linear(x, w2, b2), 0.0)
    x = jnp.maximum(linear(x, w3, b3), 0.0)
    x = jnp.maximum(linear(x, w4, b4), 0.0)
    x = jnp.maximum(linear(x, w5, b5), 0.0)

    h = h_scr[...]
    H = h.shape[-1]

    # Fused GRU: two (B,H)x(H,4H) MXU pushes instead of six (B,H)x(H,H).
    # Column layout of the 4H slab: [r | z | n_x | n_h], with zero blocks so
    # the n-gate keeps its x-side and h-side contributions separate:
    #   gates[:, 0H:1H] = x@Wir + h@Whr + bir + bhr
    #   gates[:, 1H:2H] = x@Wiz + h@Whz + biz + bhz
    #   gates[:, 2H:3H] = x@Win + bin
    #   gates[:, 3H:4H] = h@Whn + bhn
    gates = (jnp.dot(x, w_gx[...], preferred_element_type=jnp.float32)
             + jnp.dot(h, w_gh[...], preferred_element_type=jnp.float32)
             + b_g[...])

    r = jax.nn.sigmoid(gates[:, 0 * H:1 * H])
    z = jax.nn.sigmoid(gates[:, 1 * H:2 * H])
    n = jnp.tanh(gates[:, 2 * H:3 * H] + r * gates[:, 3 * H:4 * H])
    h_new = n + z * (h - n)          # == (1 - z) * n + z * h

    h_scr[...] = h_new
    feat_ref[0] = h_new
    # Head: lane-dense (B, 128) store; wrapper slices back to n_actions.
    q_ref[0] = linear(h_new, w_head, b_head)


def make_params(key, input_shape, hidden_dim, n_actions):
    """Deterministic synthetic parameters (PyTorch-style, pre-transposed to (in,out))."""
    dims = [
        ("w1", (input_shape, 2 * hidden_dim)), ("b1", (1, 2 * hidden_dim)),
        ("w2", (2 * hidden_dim, 2 * hidden_dim)), ("b2", (1, 2 * hidden_dim)),
        ("w3", (2 * hidden_dim, 2 * hidden_dim)), ("b3", (1, 2 * hidden_dim)),
        ("w4", (2 * hidden_dim, 2 * hidden_dim)), ("b4", (1, 2 * hidden_dim)),
        ("w5", (2 * hidden_dim, hidden_dim)), ("b5", (1, hidden_dim)),
        ("wir", (hidden_dim, hidden_dim)), ("wiz", (hidden_dim, hidden_dim)),
        ("win", (hidden_dim, hidden_dim)),
        ("whr", (hidden_dim, hidden_dim)), ("whz", (hidden_dim, hidden_dim)),
        ("whn", (hidden_dim, hidden_dim)),
        ("bir", (1, hidden_dim)), ("biz", (1, hidden_dim)), ("bin", (1, hidden_dim)),
        ("bhr", (1, hidden_dim)), ("bhz", (1, hidden_dim)), ("bhn", (1, hidden_dim)),
        ("wq", (hidden_dim, n_actions)), ("bq", (1, n_actions)),
    ]
    params = {}
    for name, shape in dims:
        key, sub = jax.random.split(key)
        params[name] = (jax.random.normal(sub, shape, dtype=jnp.float32)
                        * (0.1 / jnp.sqrt(float(shape[0]))))
    return params


def fuse_params(params, hidden_dim, n_actions):
    """Wrapper-side weight fusion / lane padding (done once, outside the kernel)."""
    H, A = hidden_dim, n_actions
    P = max(128, ((A + 127) // 128) * 128)          # lane-dense head width
    zH = jnp.zeros((H, H), jnp.float32)
    w_gx = jnp.concatenate([params["wir"], params["wiz"], params["win"], zH], axis=1)
    w_gh = jnp.concatenate([params["whr"], params["whz"], zH, params["whn"]], axis=1)
    b_g = jnp.concatenate([params["bir"] + params["bhr"],
                           params["biz"] + params["bhz"],
                           params["bin"], params["bhn"]], axis=1)
    w_head = jnp.zeros((H, P), jnp.float32).at[:, :A].set(params["wq"])
    b_head = jnp.zeros((1, P), jnp.float32).at[:, :A].set(params["bq"])
    fused = {k: params[k] for k in
             ["w1", "b1", "w2", "b2", "w3", "b3", "w4", "b4", "w5", "b5"]}
    fused.update(w_gx=w_gx, w_gh=w_gh, b_g=b_g, w_head=w_head, b_head=b_head)
    return fused


@functools.partial(jax.jit, static_argnames=("n_actions",))
def rnn_agent_rollout(inputs_seq, hidden_state, fused, n_actions):
    """Run T GRU steps inside one pallas_call. Returns (q[T,B,A], feature[T,B,H])."""
    T, B, in_dim = inputs_seq.shape
    H = fused["w5"].shape[-1]
    GN = fused["w_gx"].shape[-1]
    P = fused["w_head"].shape[-1]
    h0 = hidden_state.reshape(-1, H).astype(jnp.float32)

    def whole(arr):
        nd = arr.ndim
        return pl.BlockSpec(arr.shape, lambda t, _nd=nd: (0,) * _nd)

    weight_names = ["w1", "b1", "w2", "b2", "w3", "b3", "w4", "b4", "w5", "b5",
                    "w_gx", "w_gh", "b_g", "w_head", "b_head"]
    weights = [fused[k] for k in weight_names]

    ordered = [inputs_seq.astype(jnp.float32), h0] + weights
    in_specs = ([pl.BlockSpec((1, B, in_dim), lambda t: (t, 0, 0)),
                 whole(h0)] + [whole(w) for w in weights])

    flops_step = 2 * B * (in_dim * 2 * H + 3 * (2 * H) * (2 * H)
                          + (2 * H) * H + 2 * H * GN + H * P)
    transc_step = 3 * B * H
    bytes_weights = 4 * sum(int(w.size) for w in weights)
    bytes_io = 4 * (T * B * in_dim + B * H + T * B * (P + H))
    cost = pl.CostEstimate(flops=T * flops_step,
                           transcendentals=T * transc_step,
                           bytes_accessed=bytes_weights + bytes_io)

    q_pad, feat = pl.pallas_call(
        rnn_agent_kernel,
        out_shape=(
            jax.ShapeDtypeStruct((T, B, P), jnp.float32),
            jax.ShapeDtypeStruct((T, B, H), jnp.float32),
        ),
        grid_spec=pltpu.PrefetchScalarGridSpec(
            num_scalar_prefetch=0,
            grid=(T,),
            in_specs=in_specs,
            out_specs=(
                pl.BlockSpec((1, B, P), lambda t: (t, 0, 0)),
                pl.BlockSpec((1, B, H), lambda t: (t, 0, 0)),
            ),
            scratch_shapes=[pltpu.VMEM((B, H), jnp.float32)],
        ),
        compiler_params=pltpu.CompilerParams(
            dimension_semantics=("arbitrary",)),   # time carries hidden state
        cost_estimate=cost,
    )(*ordered)

    return q_pad[..., :n_actions], feat


def rnn_agent_forward(inputs, hidden_state, fused, n_actions):
    """Single-step forward, exactly like RNNAgent.forward: returns (q, feature)."""
    q_seq, feat_seq = rnn_agent_rollout(inputs[None], hidden_state, fused, n_actions)
    return q_seq[0], feat_seq[0]


# ----------------------------- pure-JAX reference -----------------------------

def reference_step(params, x, h):
    x = jax.nn.relu(x @ params["w1"] + params["b1"])
    x = jax.nn.relu(x @ params["w2"] + params["b2"])
    x = jax.nn.relu(x @ params["w3"] + params["b3"])
    x = jax.nn.relu(x @ params["w4"] + params["b4"])
    x = jax.nn.relu(x @ params["w5"] + params["b5"])
    h = h.reshape(-1, x.shape[-1])
    r = jax.nn.sigmoid(x @ params["wir"] + params["bir"] + h @ params["whr"] + params["bhr"])
    z = jax.nn.sigmoid(x @ params["wiz"] + params["biz"] + h @ params["whz"] + params["bhz"])
    n = jnp.tanh(x @ params["win"] + params["bin"] + r * (h @ params["whn"] + params["bhn"]))
    h_new = (1.0 - z) * n + z * h
    q = h_new @ params["wq"] + params["bq"]
    return q, h_new


def reference_rollout(params, xs, h0):
    def step(h, x):
        q, h_new = reference_step(params, x, h)
        return h_new, (q, h_new)
    _, (qs, hs) = jax.lax.scan(step, h0, xs)
    return qs, hs


if __name__ == "__main__":
    # Small shapes consistent with the module's forward.
    batch = 8            # batch_size * n_agents flattened
    input_shape = 48     # obs + extras for the first train task
    hidden_dim = 32      # args.rnn_hidden_dim
    n_actions = 10       # tasks2args[task].n_actions
    seq_len = 6          # rollout length for the in-kernel time loop

    key = jax.random.PRNGKey(0)
    k_in, k_seq, k_h, k_p = jax.random.split(key, 4)
    params = make_params(k_p, input_shape, hidden_dim, n_actions)
    fused = fuse_params(params, hidden_dim, n_actions)

    inputs = jax.random.normal(k_in, (batch, input_shape), dtype=jnp.float32)
    # init_hidden() returns zeros; perturb slightly so the GRU path is exercised.
    hidden_state = 0.1 * jax.random.normal(k_h, (batch, hidden_dim), dtype=jnp.float32)

    # --- single-step forward (matches RNNAgent.forward semantics) ---
    q, feature = rnn_agent_forward(inputs, hidden_state, fused, n_actions)
    q = jax.block_until_ready(q)
    feature = jax.block_until_ready(feature)

    q_ref, feat_ref = reference_step(params, inputs, hidden_state)
    assert q.shape == (batch, n_actions) and feature.shape == (batch, hidden_dim)
    assert jnp.allclose(q, q_ref, atol=1e-4, rtol=1e-3)
    assert jnp.allclose(feature, feat_ref, atol=1e-4, rtol=1e-3)

    # --- multi-step rollout: time loop inside the kernel, weights VMEM-resident ---
    xs = jax.random.normal(k_seq, (seq_len, batch, input_shape), dtype=jnp.float32)
    qs, feats = rnn_agent_rollout(xs, hidden_state, fused, n_actions)
    qs = jax.block_until_ready(qs)
    feats = jax.block_until_ready(feats)

    qs_ref, feats_ref = reference_rollout(params, xs, hidden_state)
    assert qs.shape == (seq_len, batch, n_actions)
    assert feats.shape == (seq_len, batch, hidden_dim)
    assert jnp.allclose(qs, qs_ref, atol=1e-4, rtol=1e-3)
    assert jnp.allclose(feats, feats_ref, atol=1e-4, rtol=1e-3)

    print("KERNEL_OK")
</pallas_src>

<mosaic_0001>
module attributes {stable_mosaic.version = 11 : i64} {
  func.func @rnn_agent_kernel(%arg0: i32, %arg1: memref<1x8x48xf32, #tpu.memory_space<vmem>>, %arg2: memref<8x32xf32, #tpu.memory_space<vmem>>, %arg3: memref<48x64xf32, #tpu.memory_space<vmem>>, %arg4: memref<1x64xf32, #tpu.memory_space<vmem>>, %arg5: memref<64x64xf32, #tpu.memory_space<vmem>>, %arg6: memref<1x64xf32, #tpu.memory_space<vmem>>, %arg7: memref<64x64xf32, #tpu.memory_space<vmem>>, %arg8: memref<1x64xf32, #tpu.memory_space<vmem>>, %arg9: memref<64x64xf32, #tpu.memory_space<vmem>>, %arg10: memref<1x64xf32, #tpu.memory_space<vmem>>, %arg11: memref<64x32xf32, #tpu.memory_space<vmem>>, %arg12: memref<1x32xf32, #tpu.memory_space<vmem>>, %arg13: memref<32x128xf32, #tpu.memory_space<vmem>>, %arg14: memref<32x128xf32, #tpu.memory_space<vmem>>, %arg15: memref<1x128xf32, #tpu.memory_space<vmem>>, %arg16: memref<32x128xf32, #tpu.memory_space<vmem>>, %arg17: memref<1x128xf32, #tpu.memory_space<vmem>>, %arg18: memref<1x8x128xf32, #tpu.memory_space<vmem>>, %arg19: memref<1x8x32xf32, #tpu.memory_space<vmem>>, %arg20: memref<8x32xf32, #tpu.memory_space<vmem>>) attributes {dimension_semantics = [#tpu.dimension_semantics<arbitrary>], iteration_bounds = array<i64: 1>, scalar_prefetch = 0 : i64, scratch_operands = 1 : i64, tpu.core_type = #tpu.core_type<tc>, window_params = [{transform_indices = @transform_0, window_bounds = array<i64: 1, 8, 48>}, {pipeline_mode = #tpu.pipeline_mode<synchronous>, transform_indices = @transform_1, window_bounds = array<i64: 8, 32>}, {pipeline_mode = #tpu.pipeline_mode<synchronous>, transform_indices = @transform_2, window_bounds = array<i64: 48, 64>}, {pipeline_mode = #tpu.pipeline_mode<synchronous>, transform_indices = @transform_3, window_bounds = array<i64: 1, 64>}, {pipeline_mode = #tpu.pipeline_mode<synchronous>, transform_indices = @transform_4, window_bounds = array<i64: 64, 64>}, {pipeline_mode = #tpu.pipeline_mode<synchronous>, transform_indices = @transform_5, window_bounds = array<i64: 1, 64>}, {pipeline_mode = #tpu.pipeline_mode<synchronous>, transform_indices = @transform_6, window_bounds = array<i64: 64, 64>}, {pipeline_mode = #tpu.pipeline_mode<synchronous>, transform_indices = @transform_7, window_bounds = array<i64: 1, 64>}, {pipeline_mode = #tpu.pipeline_mode<synchronous>, transform_indices = @transform_8, window_bounds = array<i64: 64, 64>}, {pipeline_mode = #tpu.pipeline_mode<synchronous>, transform_indices = @transform_9, window_bounds = array<i64: 1, 64>}, {pipeline_mode = #tpu.pipeline_mode<synchronous>, transform_indices = @transform_10, window_bounds = array<i64: 64, 32>}, {pipeline_mode = #tpu.pipeline_mode<synchronous>, transform_indices = @transform_11, window_bounds = array<i64: 1, 32>}, {pipeline_mode = #tpu.pipeline_mode<synchronous>, transform_indices = @transform_12, window_bounds = array<i64: 32, 128>}, {pipeline_mode = #tpu.pipeline_mode<synchronous>, transform_indices = @transform_13, window_bounds = array<i64: 32, 128>}, {pipeline_mode = #tpu.pipeline_mode<synchronous>, transform_indices = @transform_14, window_bounds = array<i64: 1, 128>}, {pipeline_mode = #tpu.pipeline_mode<synchronous>, transform_indices = @transform_15, window_bounds = array<i64: 32, 128>}, {pipeline_mode = #tpu.pipeline_mode<synchronous>, transform_indices = @transform_16, window_bounds = array<i64: 1, 128>}, {transform_indices = @transform_17, window_bounds = array<i64: 1, 8, 128>}, {transform_indices = @transform_18, window_bounds = array<i64: 1, 8, 32>}]} {
    %c0_i32 = arith.constant 0 : i32
    %0 = arith.cmpi eq, %arg0, %c0_i32 : i32
    %1 = arith.extui %0 : i1 to i32
    %c0_i32_0 = arith.constant 0 : i32
    %2 = arith.cmpi ne, %1, %c0_i32_0 : i32
    scf.if %2 {
      %c0_57 = arith.constant 0 : index
      %c0_58 = arith.constant 0 : index
      %81 = vector.load %arg2[%c0_57, %c0_58] : memref<8x32xf32, #tpu.memory_space<vmem>>, vector<8x32xf32>
      %c0_59 = arith.constant 0 : index
      %c0_60 = arith.constant 0 : index
      %82 = vector.load %arg20[%c0_59, %c0_60] : memref<8x32xf32, #tpu.memory_space<vmem>>, vector<8x32xf32>
      tpu.vector_store %arg20[%c0_59, %c0_60], %81 {strides = array<i32>} : memref<8x32xf32, #tpu.memory_space<vmem>>, vector<8x32xf32>,
    } else {
    }
    %c0 = arith.constant 0 : index
    %c0_1 = arith.constant 0 : index
    %c0_2 = arith.constant 0 : index
    %3 = vector.load %arg1[%c0, %c0_1, %c0_2] : memref<1x8x48xf32, #tpu.memory_space<vmem>>, vector<1x8x48xf32>
    %4 = vector.shape_cast %3 : vector<1x8x48xf32> to vector<8x48xf32>
    %c0_3 = arith.constant 0 : index
    %c0_4 = arith.constant 0 : index
    %5 = vector.load %arg3[%c0_3, %c0_4] : memref<48x64xf32, #tpu.memory_space<vmem>>, vector<48x64xf32>
    %cst = arith.constant dense<0.000000e+00> : vector<8x64xf32>
    %6 = tpu.matmul %4, %5, %cst {dimension_numbers = #tpu.dot_dimension_numbers<[1], [0], [0], [1], [0, 0, 1, 1], [], []>} : vector<8x48xf32>, vector<48x64xf32>, vector<8x64xf32> -> vector<8x64xf32>
    %c0_5 = arith.constant 0 : index
    %c0_6 = arith.constant 0 : index
    %7 = vector.load %arg4[%c0_5, %c0_6] : memref<1x64xf32, #tpu.memory_space<vmem>>, vector<1x64xf32>
    %8 = vector.broadcast %7 : vector<1x64xf32> to vector<8x64xf32>
    %9 = arith.addf %6, %8 : vector<8x64xf32>
    %cst_7 = arith.constant 0.000000e+00 : f32
    %10 = vector.broadcast %cst_7 : f32 to vector<8x64xf32>
    %11 = arith.maximumf %9, %10 : vector<8x64xf32>
    %c0_8 = arith.constant 0 : index
    %c0_9 = arith.constant 0 : index
    %12 = vector.load %arg5[%c0_8, %c0_9] : memref<64x64xf32, #tpu.memory_space<vmem>>, vector<64x64xf32>
    %cst_10 = arith.constant dense<0.000000e+00> : vector<8x64xf32>
    %13 = tpu.matmul %11, %12, %cst_10 {dimension_numbers = #tpu.dot_dimension_numbers<[1], [0], [0], [1], [0, 0, 1, 1], [], []>} : vector<8x64xf32>, vector<64x64xf32>, vector<8x64xf32> -> vector<8x64xf32>
    %c0_11 = arith.constant 0 : index
    %c0_12 = arith.constant 0 : index
    %14 = vector.load %arg6[%c0_11, %c0_12] : memref<1x64xf32, #tpu.memory_space<vmem>>, vector<1x64xf32>
    %15 = vector.broadcast %14 : vector<1x64xf32> to vector<8x64xf32>
    %16 = arith.addf %13, %15 : vector<8x64xf32>
    %cst_13 = arith.constant 0.000000e+00 : f32
    %17 = vector.broadcast %cst_13 : f32 to vector<8x64xf32>
    %18 = arith.maximumf %16, %17 : vector<8x64xf32>
    %c0_14 = arith.constant 0 : index
    %c0_15 = arith.constant 0 : index
    %19 = vector.load %arg7[%c0_14, %c0_15] : memref<64x64xf32, #tpu.memory_space<vmem>>, vector<64x64xf32>
    %cst_16 = arith.constant dense<0.000000e+00> : vector<8x64xf32>
    %20 = tpu.matmul %18, %19, %cst_16 {dimension_numbers = #tpu.dot_dimension_numbers<[1], [0], [0], [1], [0, 0, 1, 1], [], []>} : vector<8x64xf32>, vector<64x64xf32>, vector<8x64xf32> -> vector<8x64xf32>
    %c0_17 = arith.constant 0 : index
    %c0_18 = arith.constant 0 : index
    %21 = vector.load %arg8[%c0_17, %c0_18] : memref<1x64xf32, #tpu.memory_space<vmem>>, vector<1x64xf32>
    %22 = vector.broadcast %21 : vector<1x64xf32> to vector<8x64xf32>
    %23 = arith.addf %20, %22 : vector<8x64xf32>
    %cst_19 = arith.constant 0.000000e+00 : f32
    %24 = vector.broadcast %cst_19 : f32 to vector<8x64xf32>
    %25 = arith.maximumf %23, %24 : vector<8x64xf32>
    %c0_20 = arith.constant 0 : index
    %c0_21 = arith.constant 0 : index
    %26 = vector.load %arg9[%c0_20, %c0_21] : memref<64x64xf32, #tpu.memory_space<vmem>>, vector<64x64xf32>
    %cst_22 = arith.constant dense<0.000000e+00> : vector<8x64xf32>
    %27 = tpu.matmul %25, %26, %cst_22 {dimension_numbers = #tpu.dot_dimension_numbers<[1], [0], [0], [1], [0, 0, 1, 1], [], []>} : vector<8x64xf32>, vector<64x64xf32>, vector<8x64xf32> -> vector<8x64xf32>
    %c0_23 = arith.constant 0 : index
    %c0_24 = arith.constant 0 : index
    %28 = vector.load %arg10[%c0_23, %c0_24] : memref<1x64xf32, #tpu.memory_space<vmem>>, vector<1x64xf32>
    %29 = vector.broadcast %28 : vector<1x64xf32> to vector<8x64xf32>
    %30 = arith.addf %27, %29 : vector<8x64xf32>
    %cst_25 = arith.constant 0.000000e+00 : f32
    %31 = vector.broadcast %cst_25 : f32 to vector<8x64xf32>
    %32 = arith.maximumf %30, %31 : vector<8x64xf32>
    %c0_26 = arith.constant 0 : index
    %c0_27 = arith.constant 0 : index
    %33 = vector.load %arg11[%c0_26, %c0_27] : memref<64x32xf32, #tpu.memory_space<vmem>>, vector<64x32xf32>
    %cst_28 = arith.constant dense<0.000000e+00> : vector<8x32xf32>
    %34 = tpu.matmul %32, %33, %cst_28 {dimension_numbers = #tpu.dot_dimension_numbers<[1], [0], [0], [1], [0, 0, 1, 1], [], []>} : vector<8x64xf32>, vector<64x32xf32>, vector<8x32xf32> -> vector<8x32xf32>
    %c0_29 = arith.constant 0 : index
    %c0_30 = arith.constant 0 : index
    %35 = vector.load %arg12[%c0_29, %c0_30] : memref<1x32xf32, #tpu.memory_space<vmem>>, vector<1x32xf32>
    %36 = vector.broadcast %35 : vector<1x32xf32> to vector<8x32xf32>
    %37 = arith.addf %34, %36 : vector<8x32xf32>
    %cst_31 = arith.constant 0.000000e+00 : f32
    %38 = vector.broadcast %cst_31 : f32 to vector<8x32xf32>
    %39 = arith.maximumf %37, %38 : vector<8x32xf32>
    %c0_32 = arith.constant 0 : index
    %c0_33 = arith.constant 0 : index
    %40 = vector.load %arg20[%c0_32, %c0_33] : memref<8x32xf32, #tpu.memory_space<vmem>>, vector<8x32xf32>
    %c0_34 = arith.constant 0 : index
    %c0_35 = arith.constant 0 : index
    %41 = vector.load %arg13[%c0_34, %c0_35] : memref<32x128xf32, #tpu.memory_space<vmem>>, vector<32x128xf32>
    %cst_36 = arith.constant dense<0.000000e+00> : vector<8x128xf32>
    %42 = tpu.matmul %39, %41, %cst_36 {dimension_numbers = #tpu.dot_dimension_numbers<[1], [0], [0], [1], [0, 0, 1, 1], [], []>} : vector<8x32xf32>, vector<32x128xf32>, vector<8x128xf32> -> vector<8x128xf32>
    %c0_37 = arith.constant 0 : index
    %c0_38 = arith.constant 0 : index
    %43 = vector.load %arg14[%c0_37, %c0_38] : memref<32x128xf32, #tpu.memory_space<vmem>>, vector<32x128xf32>
    %cst_39 = arith.constant dense<0.000000e+00> : vector<8x128xf32>
    %44 = tpu.matmul %40, %43, %cst_39 {dimension_numbers = #tpu.dot_dimension_numbers<[1], [0], [0], [1], [0, 0, 1, 1], [], []>} : vector<8x32xf32>, vector<32x128xf32>, vector<8x128xf32> -> vector<8x128xf32>
    %45 = arith.addf %42, %44 : vector<8x128xf32>
    %c0_40 = arith.constant 0 : index
    %c0_41 = arith.constant 0 : index
    %46 = vector.load %arg15[%c0_40, %c0_41] : memref<1x128xf32, #tpu.memory_space<vmem>>, vector<1x128xf32>
    %47 = vector.broadcast %46 : vector<1x128xf32> to vector<8x128xf32>
    %48 = arith.addf %45, %47 : vector<8x128xf32>
    %49 = vector.extract_strided_slice %48 {offsets = [0, 0], sizes = [8, 32], strides = [1, 1]} : vector<8x128xf32> to vector<8x32xf32>
    %50 = arith.negf %49 : vector<8x32xf32>
    %51 = math.exp %50 : vector<8x32xf32>
    %cst_42 = arith.constant 1.000000e+00 : f32
    %52 = vector.broadcast %cst_42 : f32 to vector<8x32xf32>
    %53 = arith.addf %52, %51 : vector<8x32xf32>
    %54 = arith.divf %52, %53 : vector<8x32xf32>
    %55 = vector.extract_strided_slice %48 {offsets = [0, 32], sizes = [8, 32], strides = [1, 1]} : vector<8x128xf32> to vector<8x32xf32>
    %56 = arith.negf %55 : vector<8x32xf32>
    %57 = math.exp %56 : vector<8x32xf32>
    %cst_43 = arith.constant 1.000000e+00 : f32
    %58 = vector.broadcast %cst_43 : f32 to vector<8x32xf32>
    %59 = arith.addf %58, %57 : vector<8x32xf32>
    %60 = arith.divf %58, %59 : vector<8x32xf32>
    %61 = vector.extract_strided_slice %48 {offsets = [0, 64], sizes = [8, 32], strides = [1, 1]} : vector<8x128xf32> to vector<8x32xf32>
    %62 = vector.extract_strided_slice %48 {offsets = [0, 96], sizes = [8, 32], strides = [1, 1]} : vector<8x128xf32> to vector<8x32xf32>
    %63 = arith.mulf %54, %62 : vector<8x32xf32>
    %64 = arith.addf %61, %63 : vector<8x32xf32>
    %65 = math.tanh %64 : vector<8x32xf32>
    %66 = arith.subf %40, %65 : vector<8x32xf32>
    %67 = arith.mulf %60, %66 : vector<8x32xf32>
    %68 = arith.addf %65, %67 : vector<8x32xf32>
    %c0_44 = arith.constant 0 : index
    %c0_45 = arith.constant 0 : index
    %69 = vector.load %arg20[%c0_44, %c0_45] : memref<8x32xf32, #tpu.memory_space<vmem>>, vector<8x32xf32>
    tpu.vector_store %arg20[%c0_44, %c0_45], %68 {strides = array<i32>} : memref<8x32xf32, #tpu.memory_space<vmem>>, vector<8x32xf32>,
    %c0_46 = arith.constant 0 : index
    %c0_47 = arith.constant 0 : index
    %c0_48 = arith.constant 0 : index
    %70 = vector.load %arg19[%c0_46, %c0_47, %c0_48] : memref<1x8x32xf32, #tpu.memory_space<vmem>>, vector<1x8x32xf32>
    %71 = vector.shape_cast %70 : vector<1x8x32xf32> to vector<8x32xf32>
    %72 = vector.shape_cast %68 : vector<8x32xf32> to vector<1x8x32xf32>
    tpu.vector_store %arg19[%c0_46, %c0_47, %c0_48], %72 {strides = array<i32>} : memref<1x8x32xf32, #tpu.memory_space<vmem>>, vector<1x8x32xf32>,
    %c0_49 = arith.constant 0 : index
    %c0_50 = arith.constant 0 : index
    %73 = vector.load %arg16[%c0_49, %c0_50] : memref<32x128xf32, #tpu.memory_space<vmem>>, vector<32x128xf32>
    %cst_51 = arith.constant dense<0.000000e+00> : vector<8x128xf32>
    %74 = tpu.matmul %68, %73, %cst_51 {dimension_numbers = #tpu.dot_dimension_numbers<[1], [0], [0], [1], [0, 0, 1, 1], [], []>} : vector<8x32xf32>, vector<32x128xf32>, vector<8x128xf32> -> vector<8x128xf32>
    %c0_52 = arith.constant 0 : index
    %c0_53 = arith.constant 0 : index
    %75 = vector.load %arg17[%c0_52, %c0_53] : memref<1x128xf32, #tpu.memory_space<vmem>>, vector<1x128xf32>
    %76 = vector.broadcast %75 : vector<1x128xf32> to vector<8x128xf32>
    %77 = arith.addf %74, %76 : vector<8x128xf32>
    %c0_54 = arith.constant 0 : index
    %c0_55 = arith.constant 0 : index
    %c0_56 = arith.constant 0 : index
    %78 = vector.load %arg18[%c0_54, %c0_55, %c0_56] : memref<1x8x128xf32, #tpu.memory_space<vmem>>, vector<1x8x128xf32>
    %79 = vector.shape_cast %78 : vector<1x8x128xf32> to vector<8x128xf32>
    %80 = vector.shape_cast %77 : vector<8x128xf32> to vector<1x8x128xf32>
    tpu.vector_store %arg18[%c0_54, %c0_55, %c0_56], %80 {strides = array<i32>} : memref<1x8x128xf32, #tpu.memory_space<vmem>>, vector<1x8x128xf32>,
    return
  }
  func.func @transform_0(%arg0: i32) -> (i32, i32, i32) {
    %c0_i32 = arith.constant 0 : i32
    %c0_i32_0 = arith.constant 0 : i32
    %c0_i32_1 = arith.constant 0 : i32
    return %arg0, %c0_i32, %c0_i32_0 : i32, i32, i32
  }
  func.func @transform_1(%arg0: i32) -> (i32, i32) {
    %c0_i32 = arith.constant 0 : i32
    %c0_i32_0 = arith.constant 0 : i32
    %c0_i32_1 = arith.constant 0 : i32
    return %c0_i32, %c0_i32_0 : i32, i32
  }
  func.func @transform_2(%arg0: i32) -> (i32, i32) {
    %c0_i32 = arith.constant 0 : i32
    %c0_i32_0 = arith.constant 0 : i32
    %c0_i32_1 = arith.constant 0 : i32
    return %c0_i32, %c0_i32_0 : i32, i32
  }
  func.func @transform_3(%arg0: i32) -> (i32, i32) {
    %c0_i32 = arith.constant 0 : i32
    %c0_i32_0 = arith.constant 0 : i32
    %c0_i32_1 = arith.constant 0 : i32
    return %c0_i32, %c0_i32_0 : i32, i32
  }
  func.func @transform_4(%arg0: i32) -> (i32, i32) {
    %c0_i32 = arith.constant 0 : i32
    %c0_i32_0 = arith.constant 0 : i32
    %c0_i32_1 = arith.constant 0 : i32
    return %c0_i32, %c0_i32_0 : i32, i32
  }
  func.func @transform_5(%arg0: i32) -> (i32, i32) {
    %c0_i32 = arith.constant 0 : i32
    %c0_i32_0 = arith.constant 0 : i32
    %c0_i32_1 = arith.constant 0 : i32
    return %c0_i32, %c0_i32_0 : i32, i32
  }
  func.func @transform_6(%arg0: i32) -> (i32, i32) {
    %c0_i32 = arith.constant 0 : i32
    %c0_i32_0 = arith.constant 0 : i32
    %c0_i32_1 = arith.constant 0 : i32
    return %c0_i32, %c0_i32_0 : i32, i32
  }
  func.func @transform_7(%arg0: i32) -> (i32, i32) {
    %c0_i32 = arith.constant 0 : i32
    %c0_i32_0 = arith.constant 0 : i32
    %c0_i32_1 = arith.constant 0 : i32
    return %c0_i32, %c0_i32_0 : i32, i32
  }
  func.func @transform_8(%arg0: i32) -> (i32, i32) {
    %c0_i32 = arith.constant 0 : i32
    %c0_i32_0 = arith.constant 0 : i32
    %c0_i32_1 = arith.constant 0 : i32
    return %c0_i32, %c0_i32_0 : i32, i32
  }
  func.func @transform_9(%arg0: i32) -> (i32, i32) {
    %c0_i32 = arith.constant 0 : i32
    %c0_i32_0 = arith.constant 0 : i32
    %c0_i32_1 = arith.constant 0 : i32
    return %c0_i32, %c0_i32_0 : i32, i32
  }
  func.func @transform_10(%arg0: i32) -> (i32, i32) {
    %c0_i32 = arith.constant 0 : i32
    %c0_i32_0 = arith.constant 0 : i32
    %c0_i32_1 = arith.constant 0 : i32
    return %c0_i32, %c0_i32_0 : i32, i32
  }
  func.func @transform_11(%arg0: i32) -> (i32, i32) {
    %c0_i32 = arith.constant 0 : i32
    %c0_i32_0 = arith.constant 0 : i32
    %c0_i32_1 = arith.constant 0 : i32
    return %c0_i32, %c0_i32_0 : i32, i32
  }
  func.func @transform_12(%arg0: i32) -> (i32, i32) {
    %c0_i32 = arith.constant 0 : i32
    %c0_i32_0 = arith.constant 0 : i32
    %c0_i32_1 = arith.constant 0 : i32
    return %c0_i32, %c0_i32_0 : i32, i32
  }
  func.func @transform_13(%arg0: i32) -> (i32, i32) {
    %c0_i32 = arith.constant 0 : i32
    %c0_i32_0 = arith.constant 0 : i32
    %c0_i32_1 = arith.constant 0 : i32
    return %c0_i32, %c0_i32_0 : i32, i32
  }
  func.func @transform_14(%arg0: i32) -> (i32, i32) {
    %c0_i32 = arith.constant 0 : i32
    %c0_i32_0 = arith.constant 0 : i32
    %c0_i32_1 = arith.constant 0 : i32
    return %c0_i32, %c0_i32_0 : i32, i32
  }
  func.func @transform_15(%arg0: i32) -> (i32, i32) {
    %c0_i32 = arith.constant 0 : i32
    %c0_i32_0 = arith.constant 0 : i32
    %c0_i32_1 = arith.constant 0 : i32
    return %c0_i32, %c0_i32_0 : i32, i32
  }
  func.func @transform_16(%arg0: i32) -> (i32, i32) {
    %c0_i32 = arith.constant 0 : i32
    %c0_i32_0 = arith.constant 0 : i32
    %c0_i32_1 = arith.constant 0 : i32
    return %c0_i32, %c0_i32_0 : i32, i32
  }
  func.func @transform_17(%arg0: i32) -> (i32, i32, i32) {
    %c0_i32 = arith.constant 0 : i32
    %c0_i32_0 = arith.constant 0 : i32
    %c0_i32_1 = arith.constant 0 : i32
    return %arg0, %c0_i32, %c0_i32_0 : i32, i32, i32
  }
  func.func @transform_18(%arg0: i32) -> (i32, i32, i32) {
    %c0_i32 = arith.constant 0 : i32
    %c0_i32_0 = arith.constant 0 : i32
    %c0_i32_1 = arith.constant 0 : i32
    return %arg0, %c0_i32, %c0_i32_0 : i32, i32, i32
  }
}

</mosaic_0001>

<llo_original>
// kernel: rnn_agent_rollout.1
$region0: #{rnn_agent_rollout.1}
  #allocation0 [shape = 'u32[]', space=smem, size = 0x4, offset = 0x4, fixed_abs, tag = 'smem constant byte address 0x4 - core index']
  #allocation1 [shape = 'u32[144,128]{1,0:T(1,128)}', space=vmem, size = 0x12000, scoped, tag = 'internal scratch']
  #allocation2 [shape = 'f32[8,32]{1,0:T(8,128)}', space=vmem, size = 0x1000, scoped, tag = 'scratch operand']
  %s0 = inlined_call_operand.hbm [shape: f32[1,8,48], index: 0, kind: input, shape index: {}]
  %s1 = inlined_call_operand.hbm [shape: f32[8,32], index: 1, kind: input, shape index: {}]
  %s2 = inlined_call_operand.hbm [shape: f32[48,64], index: 2, kind: input, shape index: {}]
  %s3 = inlined_call_operand.vmem [shape: f32[1,64], index: 3, kind: input, shape index: {}]
  %s4 = inlined_call_operand.vmem [shape: f32[64,64], index: 4, kind: input, shape index: {}]
  %s5 = inlined_call_operand.vmem [shape: f32[1,64], index: 5, kind: input, shape index: {}]
  %s6 = inlined_call_operand.vmem [shape: f32[64,64], index: 6, kind: input, shape index: {}]
  %s7 = inlined_call_operand.hbm [shape: f32[1,64], index: 7, kind: input, shape index: {}]
  %s8 = inlined_call_operand.hbm [shape: f32[64,64], index: 8, kind: input, shape index: {}]
  %s9 = inlined_call_operand.hbm [shape: f32[1,64], index: 9, kind: input, shape index: {}]
  %s10 = inlined_call_operand.vmem [shape: f32[64,32], index: 10, kind: input, shape index: {}]
  %s11 = inlined_call_operand.hbm [shape: f32[1,32], index: 11, kind: input, shape index: {}]
  %s12 = inlined_call_operand.hbm [shape: f32[32,128], index: 12, kind: input, shape index: {}]
  %s13 = inlined_call_operand.hbm [shape: f32[32,128], index: 13, kind: input, shape index: {}]
  %s14 = inlined_call_operand.hbm [shape: f32[1,128], index: 14, kind: input, shape index: {}]
  %s15 = inlined_call_operand.hbm [shape: f32[32,128], index: 15, kind: input, shape index: {}]
  %s16 = inlined_call_operand.hbm [shape: f32[1,128], index: 16, kind: input, shape index: {}]
  %s17 = inlined_call_operand.hbm [shape: f32[1,8,128], index: 17, kind: output, shape index: {0}]
  %s18 = inlined_call_operand.hbm [shape: f32[1,8,32], index: 18, kind: output, shape index: {1}]
  %19 = xla_tuple %s17, %s18
  %s20 = sld [smem:[#allocation0]]
  $region138: #{rnn_agent_rollout.1} parent=0
    _
  %s22 = ssub.s32 1, %s20
  %s23 = scalar_select 0, %s22, %s20
  $region1: #{rnn_agent_rollout.1} parent=0
    #allocation3 [shape = 'u8[4096]{0}', space=vmem, size = 0x1000, scoped, tag = 'input window, operand 0, single buffered']
    #allocation4 [shape = 's32[1]{0}', space=sflag, size = 0x4, scoped, tag = 'scoped memory for rnn_agent_rollout.1']
    #allocation5 [shape = 's32[1]{0}', space=sflag, size = 0x4, scoped, tag = 'scoped memory for rnn_agent_rollout.1']
    #allocation6 [shape = 'u8[4096]{0}', space=vmem, size = 0x1000, scoped, tag = 'input window, operand 1, single buffered']
    #allocation7 [shape = 's32[1]{0}', space=sflag, size = 0x4, scoped, tag = 'scoped memory for rnn_agent_rollout.1']
    #allocation8 [shape = 'u8[24576]{0}', space=vmem, size = 0x6000, scoped, tag = 'input window, operand 2, single buffered']
    #allocation9 [shape = 'u8[512]{0}', space=vmem, size = 0x400, scoped, tag = 'input window, operand 7, single buffered']
    #allocation10 [shape = 's32[1]{0}', space=sflag, size = 0x4, scoped, tag = 'scoped memory for rnn_agent_rollout.1']
    #allocation11 [shape = 'u8[32768]{0}', space=vmem, size = 0x8000, scoped, tag = 'input window, operand 8, single buffered']
    #allocation12 [shape = 'u8[512]{0}', space=vmem, size = 0x400, scoped, tag = 'input window, operand 9, single buffered']
    #allocation13 [shape = 's32[1]{0}', space=sflag, size = 0x4, scoped, tag = 'scoped memory for rnn_agent_rollout.1']
    #allocation14 [shape = 'u8[512]{0}', space=vmem, size = 0x400, scoped, tag = 'input window, operand 11, single buffered']
    #allocation15 [shape = 'u8[16384]{0}', space=vmem, size = 0x4000, scoped, tag = 'input window, operand 12, single buffered']
    #allocation16 [shape = 's32[1]{0}', space=sflag, size = 0x4, scoped, tag = 'scoped memory for rnn_agent_rollout.1']
    #allocation17 [shape = 'u8[16384]{0}', space=vmem, size = 0x4000, scoped, tag = 'input window, operand 13, single buffered']
    #allocation18 [shape = 'u8[512]{0}', space=vmem, size = 0x400, scoped, tag = 'input window, operand 14, single buffered']
    #allocation19 [shape = 's32[1]{0}', space=sflag, size = 0x4, scoped, tag = 'scoped memory for rnn_agent_rollout.1']
    #allocation20 [shape = 'u8[16384]{0}', space=vmem, size = 0x4000, scoped, tag = 'input window, operand 15, single buffered']
    #allocation21 [shape = 'u8[512]{0}', space=vmem, size = 0x400, scoped, tag = 'input window, operand 16, single buffered']
    #allocation22 [shape = 's32[1]{0}', space=sflag, size = 0x4, scoped, tag = 'scoped memory for rnn_agent_rollout.1']
    #allocation23 [shape = 'u8[4096]{0}', space=vmem, size = 0x1000, scoped, tag = 'output window, operand 0, single buffered']
    #allocation24 [shape = 'u8[4096]{0}', space=vmem, size = 0x1000, scoped, tag = 'output window, operand 1, single buffered']
    #allocation25 [shape = 's32[1]{0}', space=sflag, size = 0x4, scoped, tag = 'scoped memory for rnn_agent_rollout.1']
    %24 = vsyncpa [#allocation4], 0
    %25 = vsyncpa [#allocation7], 0
    %26 = vsyncpa [#allocation10], 0
    %27 = vsyncpa [#allocation13], 0
    %28 = vsyncpa [#allocation16], 0
    %29 = vsyncpa [#allocation19], 0
    %30 = vsyncpa [#allocation22], 0
    %31 = vsyncpa [#allocation5], 0
    %32 = vsyncpa [#allocation25], 0
    // Predicated region
    $region2: #{rnn_agent_rollout.1} parent=1 // pred_check
      _
    $region3: #{rnn_agent_rollout.1} parent=1 // pred_check_branch
      %34 = sbr.rel (0) target = $region5
    $region4: #{rnn_agent_rollout.1} parent=1 // pred_region
      %s36 = ssub.s32 128, 128
      %37 = vsyncadd [#allocation4], %s36
      %s39 = sshll.u32 [#allocation3], 4
      %s40 = int_to_ptr.vmem [resolvable:$true] %s39
      %42 = dma.hbm_to_vmem [thread:$0]  %s0, 128, %s40, [#allocation4]
    $region5: #{rnn_agent_rollout.1} parent=1 // pred_fallthru
      _
    // Predicated region
    $region6: #{rnn_agent_rollout.1} parent=1 // pred_check
      _
    $region7: #{rnn_agent_rollout.1} parent=1 // pred_check_branch
      %44 = sbr.rel (0) target = $region9
    $region8: #{rnn_agent_rollout.1} parent=1 // pred_region
      %s46 = ssub.s32 128, 128
      %47 = vsyncadd [#allocation7], %s46
      %s49 = sshll.u32 [#allocation6], 4
      %s50 = int_to_ptr.vmem [resolvable:$true] %s49
      %52 = dma.hbm_to_vmem [thread:$0]  %s1, 128, %s50, [#allocation7]
    $region9: #{rnn_agent_rollout.1} parent=1 // pred_fallthru
      _
    // Predicated region
    $region10: #{rnn_agent_rollout.1} parent=1 // pred_check
      _
    $region11: #{rnn_agent_rollout.1} parent=1 // pred_check_branch
      %54 = sbr.rel (0) target = $region13
    $region12: #{rnn_agent_rollout.1} parent=1 // pred_region
      %s56 = ssub.s32 768, 768
      %57 = vsyncadd [#allocation7], %s56
      %s58 = sshll.u32 [#allocation8], 4
      %s59 = int_to_ptr.vmem [resolvable:$true] %s58
      %64 = dma.hbm_to_vmem [thread:$0]  %s2, 768, %s59, [#allocation7], 128, 128, 8
    $region13: #{rnn_agent_rollout.1} parent=1 // pred_fallthru
      _
    // Predicated region
    $region14: #{rnn_agent_rollout.1} parent=1 // pred_check
      _
    $region15: #{rnn_agent_rollout.1} parent=1 // pred_check_branch
      %66 = sbr.rel (0) target = $region17
    $region16: #{rnn_agent_rollout.1} parent=1 // pred_region
      _
    $region17: #{rnn_agent_rollout.1} parent=1 // pred_fallthru
      _
    // Predicated region
    $region18: #{rnn_agent_rollout.1} parent=1 // pred_check
      _
    $region19: #{rnn_agent_rollout.1} parent=1 // pred_check_branch
      %68 = sbr.rel (0) target = $region21
    $region20: #{rnn_agent_rollout.1} parent=1 // pred_region
      _
    $region21: #{rnn_agent_rollout.1} parent=1 // pred_fallthru
      _
    // Predicated region
    $region22: #{rnn_agent_rollout.1} parent=1 // pred_check
      _
    $region23: #{rnn_agent_rollout.1} parent=1 // pred_check_branch
      %70 = sbr.rel (0) target = $region25
    $region24: #{rnn_agent_rollout.1} parent=1 // pred_region
      _
    $region25: #{rnn_agent_rollout.1} parent=1 // pred_fallthru
      _
    // Predicated region
    $region26: #{rnn_agent_rollout.1} parent=1 // pred_check
      _
    $region27: #{rnn_agent_rollout.1} parent=1 // pred_check_branch
      %72 = sbr.rel (0) target = $region29
    $region28: #{rnn_agent_rollout.1} parent=1 // pred_region
      _
    $region29: #{rnn_agent_rollout.1} parent=1 // pred_fallthru
      _
    // Predicated region
    $region30: #{rnn_agent_rollout.1} parent=1 // pred_check
      _
    $region31: #{rnn_agent_rollout.1} parent=1 // pred_check_branch
      %74 = sbr.rel (0) target = $region33
    $region32: #{rnn_agent_rollout.1} parent=1 // pred_region
      %s76 = ssub.s32 16, 16
      %77 = vsyncadd [#allocation10], %s76
      %s79 = sshll.u32 [#allocation9], 4
      %s80 = int_to_ptr.vmem [resolvable:$true] %s79
      %82 = dma.hbm_to_vmem [thread:$0]  %s7, 16, %s80, [#allocation10]
    $region33: #{rnn_agent_rollout.1} parent=1 // pred_fallthru
      _
    // Predicated region
    $region34: #{rnn_agent_rollout.1} parent=1 // pred_check
      _
    $region35: #{rnn_agent_rollout.1} parent=1 // pred_check_branch
      %84 = sbr.rel (0) target = $region37
    $region36: #{rnn_agent_rollout.1} parent=1 // pred_region
      %s86 = ssub.s32 1024, 1024
      %87 = vsyncadd [#allocation10], %s86
      %s88 = sshll.u32 [#allocation11], 4
      %s89 = int_to_ptr.vmem [resolvable:$true] %s88
      %94 = dma.hbm_to_vmem [thread:$0]  %s8, 1024, %s89, [#allocation10], 128, 128, 8
    $region37: #{rnn_agent_rollout.1} parent=1 // pred_fallthru
      _
    // Predicated region
    $region38: #{rnn_agent_rollout.1} parent=1 // pred_check
      _
    $region39: #{rnn_agent_rollout.1} parent=1 // pred_check_branch
      %96 = sbr.rel (0) target = $region41
    $region40: #{rnn_agent_rollout.1} parent=1 // pred_region
      %s98 = ssub.s32 16, 16
      %99 = vsyncadd [#allocation13], %s98
      %s101 = sshll.u32 [#allocation12], 4
      %s102 = int_to_ptr.vmem [resolvable:$true] %s101
      %104 = dma.hbm_to_vmem [thread:$0]  %s9, 16, %s102, [#allocation13]
    $region41: #{rnn_agent_rollout.1} parent=1 // pred_fallthru
      _
    // Predicated region
    $region42: #{rnn_agent_rollout.1} parent=1 // pred_check
      _
    $region43: #{rnn_agent_rollout.1} parent=1 // pred_check_branch
      %106 = sbr.rel (0) target = $region45
    $region44: #{rnn_agent_rollout.1} parent=1 // pred_region
      _
    $region45: #{rnn_agent_rollout.1} parent=1 // pred_fallthru
      _
    // Predicated region
    $region46: #{rnn_agent_rollout.1} parent=1 // pred_check
      _
    $region47: #{rnn_agent_rollout.1} parent=1 // pred_check_branch
      %108 = sbr.rel (0) target = $region49
    $region48: #{rnn_agent_rollout.1} parent=1 // pred_region
      %s110 = ssub.s32 16, 16
      %111 = vsyncadd [#allocation13], %s110
      %s113 = sshll.u32 [#allocation14], 4
      %s114 = int_to_ptr.vmem [resolvable:$true] %s113
      %116 = dma.hbm_to_vmem [thread:$0]  %s11, 16, %s114, [#allocation13]
    $region49: #{rnn_agent_rollout.1} parent=1 // pred_fallthru
      _
    // Predicated region
    $region50: #{rnn_agent_rollout.1} parent=1 // pred_check
      _
    $region51: #{rnn_agent_rollout.1} parent=1 // pred_check_branch
      %118 = sbr.rel (0) target = $region53
    $region52: #{rnn_agent_rollout.1} parent=1 // pred_region
      %s120 = ssub.s32 512, 512
      %121 = vsyncadd [#allocation16], %s120
      %s122 = sshll.u32 [#allocation15], 4
      %s123 = int_to_ptr.vmem [resolvable:$true] %s122
      %128 = dma.hbm_to_vmem [thread:$0]  %s12, 512, %s123, [#allocation16], 128, 128, 8
    $region53: #{rnn_agent_rollout.1} parent=1 // pred_fallthru
      _
    // Predicated region
    $region54: #{rnn_agent_rollout.1} parent=1 // pred_check
      _
    $region55: #{rnn_agent_rollout.1} parent=1 // pred_check_branch
      %130 = sbr.rel (0) target = $region57
    $region56: #{rnn_agent_rollout.1} parent=1 // pred_region
      %s132 = ssub.s32 512, 512
      %133 = vsyncadd [#allocation16], %s132
      %s134 = sshll.u32 [#allocation17], 4
      %s135 = int_to_ptr.vmem [resolvable:$true] %s134
      %140 = dma.hbm_to_vmem [thread:$0]  %s13, 512, %s135, [#allocation16], 128, 128, 8
    $region57: #{rnn_agent_rollout.1} parent=1 // pred_fallthru
      _
    // Predicated region
    $region58: #{rnn_agent_rollout.1} parent=1 // pred_check
      _
    $region59: #{rnn_agent_rollout.1} parent=1 // pred_check_branch
      %142 = sbr.rel (0) target = $region61
    $region60: #{rnn_agent_rollout.1} parent=1 // pred_region
      %s144 = ssub.s32 16, 16
      %145 = vsyncadd [#allocation19], %s144
      %s147 = sshll.u32 [#allocation18], 4
      %s148 = int_to_ptr.vmem [resolvable:$true] %s147
      %150 = dma.hbm_to_vmem [thread:$0]  %s14, 16, %s148, [#allocation19]
    $region61: #{rnn_agent_rollout.1} parent=1 // pred_fallthru
      _
    // Predicated region
    $region62: #{rnn_agent_rollout.1} parent=1 // pred_check
      _
    $region63: #{rnn_agent_rollout.1} parent=1 // pred_check_branch
      %152 = sbr.rel (0) target = $region65
    $region64: #{rnn_agent_rollout.1} parent=1 // pred_region
      %s154 = ssub.s32 512, 512
      %155 = vsyncadd [#allocation19], %s154
      %s156 = sshll.u32 [#allocation20], 4
      %s157 = int_to_ptr.vmem [resolvable:$true] %s156
      %162 = dma.hbm_to_vmem [thread:$0]  %s15, 512, %s157, [#allocation19], 128, 128, 8
    $region65: #{rnn_agent_rollout.1} parent=1 // pred_fallthru
      _
    // Predicated region
    $region66: #{rnn_agent_rollout.1} parent=1 // pred_check
      _
    $region67: #{rnn_agent_rollout.1} parent=1 // pred_check_branch
      %164 = sbr.rel (0) target = $region69
    $region68: #{rnn_agent_rollout.1} parent=1 // pred_region
      %s166 = ssub.s32 16, 16
      %167 = vsyncadd [#allocation22], %s166
      %s169 = sshll.u32 [#allocation21], 4
      %s170 = int_to_ptr.vmem [resolvable:$true] %s169
      %172 = dma.hbm_to_vmem [thread:$0]  %s16, 16, %s170, [#allocation22]
    $region69: #{rnn_agent_rollout.1} parent=1 // pred_fallthru
      _
    // Predicated region
    $region70: #{rnn_agent_rollout.1} parent=1 // pred_check
      _
    $region71: #{rnn_agent_rollout.1} parent=1 // pred_check_branch
      %174 = sbr.rel (0) target = $region73
    $region72: #{rnn_agent_rollout.1} parent=1 // pred_region
      %175 = dma.done [#allocation4], 128
    $region73: #{rnn_agent_rollout.1} parent=1 // pred_fallthru
      _
    // Predicated region
    $region74: #{rnn_agent_rollout.1} parent=1 // pred_check
      _
    $region75: #{rnn_agent_rollout.1} parent=1 // pred_check_branch
      %177 = sbr.rel (0) target = $region77
    $region76: #{rnn_agent_rollout.1} parent=1 // pred_region
      %178 = dma.done [#allocation7], 128
    $region77: #{rnn_agent_rollout.1} parent=1 // pred_fallthru
      _
    // Predicated region
    $region78: #{rnn_agent_rollout.1} parent=1 // pred_check
      _
    $region79: #{rnn_agent_rollout.1} parent=1 // pred_check_branch
      %180 = sbr.rel (0) target = $region81
    $region80: #{rnn_agent_rollout.1} parent=1 // pred_region
      %181 = dma.done [#allocation7], 768
    $region81: #{rnn_agent_rollout.1} parent=1 // pred_fallthru
      _
    // Predicated region
    $region82: #{rnn_agent_rollout.1} parent=1 // pred_check
      _
    $region83: #{rnn_agent_rollout.1} parent=1 // pred_check_branch
      %183 = sbr.rel (0) target = $region85
    $region84: #{rnn_agent_rollout.1} parent=1 // pred_region
      %184 = dma.done [#allocation10], 16
    $region85: #{rnn_agent_rollout.1} parent=1 // pred_fallthru
      _
    // Predicated region
    $region86: #{rnn_agent_rollout.1} parent=1 // pred_check
      _
    $region87: #{rnn_agent_rollout.1} parent=1 // pred_check_branch
      %186 = sbr.rel (0) target = $region89
    $region88: #{rnn_agent_rollout.1} parent=1 // pred_region
      %187 = dma.done [#allocation10], 1024
    $region89: #{rnn_agent_rollout.1} parent=1 // pred_fallthru
      _
    // Predicated region
    $region90: #{rnn_agent_rollout.1} parent=1 // pred_check
      _
    $region91: #{rnn_agent_rollout.1} parent=1 // pred_check_branch
      %189 = sbr.rel (0) target = $region93
    $region92: #{rnn_agent_rollout.1} parent=1 // pred_region
      %190 = dma.done [#allocation13], 16
    $region93: #{rnn_agent_rollout.1} parent=1 // pred_fallthru
      _
    // Predicated region
    $region94: #{rnn_agent_rollout.1} parent=1 // pred_check
      _
    $region95: #{rnn_agent_rollout.1} parent=1 // pred_check_branch
      %192 = sbr.rel (0) target = $region97
    $region96: #{rnn_agent_rollout.1} parent=1 // pred_region
      %193 = dma.done [#allocation13], 16
    $region97: #{rnn_agent_rollout.1} parent=1 // pred_fallthru
      _
    // Predicated region
    $region98: #{rnn_agent_rollout.1} parent=1 // pred_check
      _
    $region99: #{rnn_agent_rollout.1} parent=1 // pred_check_branch
      %195 = sbr.rel (0) target = $region101
    $region100: #{rnn_agent_rollout.1} parent=1 // pred_region
      %196 = dma.done [#allocation16], 512
    $region101: #{rnn_agent_rollout.1} parent=1 // pred_fallthru
      _
    // Predicated region
    $region102: #{rnn_agent_rollout.1} parent=1 // pred_check
      _
    $region103: #{rnn_agent_rollout.1} parent=1 // pred_check_branch
      %198 = sbr.rel (0) target = $region105
    $region104: #{rnn_agent_rollout.1} parent=1 // pred_region
      %199 = dma.done [#allocation16], 512
    $region105: #{rnn_agent_rollout.1} parent=1 // pred_fallthru
      _
    // Predicated region
    $region106: #{rnn_agent_rollout.1} parent=1 // pred_check
      _
    $region107: #{rnn_agent_rollout.1} parent=1 // pred_check_branch
      %201 = sbr.rel (0) target = $region109
    $region108: #{rnn_agent_rollout.1} parent=1 // pred_region
      %202 = dma.done [#allocation19], 16
    $region109: #{rnn_agent_rollout.1} parent=1 // pred_fallthru
      _
    // Predicated region
    $region110: #{rnn_agent_rollout.1} parent=1 // pred_check
      _
    $region111: #{rnn_agent_rollout.1} parent=1 // pred_check_branch
      %204 = sbr.rel (0) target = $region113
    $region112: #{rnn_agent_rollout.1} parent=1 // pred_region
      %205 = dma.done [#allocation19], 512
    $region113: #{rnn_agent_rollout.1} parent=1 // pred_fallthru
      _
    // Predicated region
    $region114: #{rnn_agent_rollout.1} parent=1 // pred_check
      _
    $region115: #{rnn_agent_rollout.1} parent=1 // pred_check_branch
      %207 = sbr.rel (0) target = $region117
    $region116: #{rnn_agent_rollout.1} parent=1 // pred_region
      %208 = dma.done [#allocation22], 16
    $region117: #{rnn_agent_rollout.1} parent=1 // pred_fallthru
      _
    %p209 = scmp.eq.s32.totalorder 0, 0
    // Predicated region
    $region118: #{rnn_agent_rollout.1} parent=1 // pred_check
      %p210 = pneg %p209
    $region119: #{rnn_agent_rollout.1} parent=1 // pred_check_branch
      %212 = sbr.rel (%p210) target = $region121
    $region120: #{rnn_agent_rollout.1} parent=1 // pred_region
      %v213 = vld [vmem:[#allocation6] sm:$0xff]
      %vm214 = vcmask 261120
      %215 = vst.msk [vmem:[#allocation2] sm:$0xff] %vm214, %v213
    $region121: #{rnn_agent_rollout.1} parent=1 // pred_fallthru
      _
    %v216 = vld [vmem:[#allocation3] sm:$0xff]
    %v217 = vld [vmem:[#allocation8] sm:$0xff]
    %v218 = vld [vmem:[#allocation8 + $0x8] sm:$0xff]
    %v219 = vld [vmem:[#allocation8 + $0x10] sm:$0xff]
    %v220 = vld [vmem:[#allocation8 + $0x18] sm:$0xff]
    %v221 = vld [vmem:[#allocation8 + $0x20] sm:$0xff]
    %v222 = vld [vmem:[#allocation8 + $0x28] sm:$0xff]
    %v223 = vld [vmem:[%s3] sm:$0x1]
    %v225 = vlaneseq
    %v226 = vshrl.u32 %v225, 7
    %v227 = vsub.s32 0, %v226
    %v228 = vrot.slane %v223, %v227
    %vm230 = vcmask 392192
    %v232 = vsel %vm230, %v216, 0
    %234 = vmatprep.subr.mxu0 0.0
    %235 = vmatpush1.msra.mxu0 %v217
    %236 = vmatprep.subr.mxu0 0.0
    %237 = vmatpush1.msra.mxu0 %v218
    %238 = vmatprep.subr.mxu0 0.0
    %239 = vmatpush1.msra.mxu0 %v219
    %240 = vmatprep.subr.mxu0 0.0
    %241 = vmatpush1.msra.mxu0 %v220
    %242 = vmatprep.subr.mxu0 0.0
    %243 = vmatpush1.msra.mxu0 %v221
    %244 = vmatprep.subr.mxu0 0.0
    %245 = vmatpush1.msra.mxu0 %v222
    %246 = vmatprep.subr.mxu0 0.0
    %247 = vmatpush1.msra.mxu0 0.0
    %248 = vmatprep.subr.mxu0 0.0
    %249 = vmatpush1.msra.mxu0 0.0
    %250 = vmatprep.subr.mxu0 0.0
    %251 = vmatpush1.msra.mxu0 0.0
    %252 = vmatprep.subr.mxu0 0.0
    %253 = vmatpush1.msra.mxu0 0.0
    %254 = vmatprep.subr.mxu0 0.0
    %255 = vmatpush1.msra.mxu0 0.0
    %256 = vmatprep.subr.mxu0 0.0
    %257 = vmatpush1.msra.mxu0 0.0
    %258 = vmatprep.subr.mxu0 0.0
    %259 = vmatpush1.msra.mxu0 0.0
    %260 = vmatprep.subr.mxu0 0.0
    %261 = vmatpush1.msra.mxu0 0.0
    %262 = vmatprep.subr.mxu0 0.0
    %263 = vmatpush1.msra.mxu0 0.0
    %264 = vmatprep.subr.mxu0 0.0
    %265 = vmatpush1.msra.mxu0 0.0
    %266 = vmatprep.subr.mxu0 0.0
    %267 = vmatpush1.msra.mxu0 0.0
    %268 = vmatprep.subr.mxu0 0.0
    %269 = vmatpush1.msra.mxu0 0.0
    %270 = vmatprep.subr.mxu0 0.0
    %271 = vmatpush1.msra.mxu0 0.0
    %272 = vmatprep.subr.mxu0 0.0
    %273 = vmatpush1.msra.mxu0 0.0
    %274 = vmatprep.subr.mxu0 0.0
    %275 = vmatpush1.msra.mxu0 0.0
    %276 = vmatprep.subr.mxu0 0.0
    %277 = vmatpush1.msra.mxu0 0.0
    %278 = vmatprep.subr.mxu0 0.0
    %279 = vmatpush1.msra.mxu0 0.0
    %280 = vmatprep.subr.mxu0 0.0
    %281 = vmatpush1.msra.mxu0 0.0
    %282 = vmatprep.subr.mxu0 0.0
    %283 = vmatpush1.msra.mxu0 0.0
    %284 = vmatprep.subr.mxu0 0.0
    %285 = vmatpush1.msra.mxu0 0.0
    %286 = vmatprep.subr.mxu0 0.0
    %287 = vmatpush1.msra.mxu0 0.0
    %288 = vmatprep.subr.mxu0 0.0
    %289 = vmatpush1.msra.mxu0 0.0
    %290 = vmatprep.subr.mxu0 0.0
    %291 = vmatpush1.msra.mxu0 0.0
    %292 = vmatprep.subr.mxu0 0.0
    %293 = vmatpush1.msra.mxu0 0.0
    %294 = vmatprep.subr.mxu0 0.0
    %295 = vmatpush1.msra.mxu0 0.0
    %296 = vmatprep.subr.mxu0 0.0
    %297 = vmatpush1.msra.mxu0 0.0
    %298 = vmatprep.mubr.f32.mxu0 0.0
    %299 = vmatmul.mubr.f32.gmra.mrb[0].mxu0 %v232
    %v300 = vpop.f32.mrb[0].mxu0
    %v301 = vadd.f32 %v228, %v300
    %v302 = vpop.f32.mrb[0].mxu0
    %303 = vdwg.mxu0
    %v304 = vmax.f32 %v301, 0.0
    %v305 = vld [vmem:[%s4] sm:$0xff]
    %v306 = vld [vmem:[%s4 + $0x8] sm:$0xff]
    %v307 = vld [vmem:[%s4 + $0x10] sm:$0xff]
    %v308 = vld [vmem:[%s4 + $0x18] sm:$0xff]
    %v309 = vld [vmem:[%s4 + $0x20] sm:$0xff]
    %v310 = vld [vmem:[%s4 + $0x28] sm:$0xff]
    %v311 = vld [vmem:[%s4 + $0x30] sm:$0xff]
    %v312 = vld [vmem:[%s4 + $0x38] sm:$0xff]
    %v313 = vld [vmem:[%s5] sm:$0x1]
    %v315 = vlaneseq
    %v316 = vshrl.u32 %v315, 7
    %v317 = vsub.s32 0, %v316
    %v318 = vrot.slane %v313, %v317
    %vm320 = vcmask 523264
    %v322 = vsel %vm320, %v304, 0
    %324 = vmatprep.subr.mxu0 0.0
    %325 = vmatpush1.msra.mxu0 %v305
    %326 = vmatprep.subr.mxu0 0.0
    %327 = vmatpush1.msra.mxu0 %v306
    %328 = vmatprep.subr.mxu0 0.0
    %329 = vmatpush1.msra.mxu0 %v307
    %330 = vmatprep.subr.mxu0 0.0
    %331 = vmatpush1.msra.mxu0 %v308
    %332 = vmatprep.subr.mxu0 0.0
    %333 = vmatpush1.msra.mxu0 %v309
    %334 = vmatprep.subr.mxu0 0.0
    %335 = vmatpush1.msra.mxu0 %v310
    %336 = vmatprep.subr.mxu0 0.0
    %337 = vmatpush1.msra.mxu0 %v311
    %338 = vmatprep.subr.mxu0 0.0
    %339 = vmatpush1.msra.mxu0 %v312
    %340 = vmatprep.subr.mxu0 0.0
    %341 = vmatpush1.msra.mxu0 0.0
    %342 = vmatprep.subr.mxu0 0.0
    %343 = vmatpush1.msra.mxu0 0.0
    %344 = vmatprep.subr.mxu0 0.0
    %345 = vmatpush1.msra.mxu0 0.0
    %346 = vmatprep.subr.mxu0 0.0
    %347 = vmatpush1.msra.mxu0 0.0
    %348 = vmatprep.subr.mxu0 0.0
    %349 = vmatpush1.msra.mxu0 0.0
    %350 = vmatprep.subr.mxu0 0.0
    %351 = vmatpush1.msra.mxu0 0.0
    %352 = vmatprep.subr.mxu0 0.0
    %353 = vmatpush1.msra.mxu0 0.0
    %354 = vmatprep.subr.mxu0 0.0
    %355 = vmatpush1.msra.mxu0 0.0
    %356 = vmatprep.subr.mxu0 0.0
    %357 = vmatpush1.msra.mxu0 0.0
    %358 = vmatprep.subr.mxu0 0.0
    %359 = vmatpush1.msra.mxu0 0.0
    %360 = vmatprep.subr.mxu0 0.0
    %361 = vmatpush1.msra.mxu0 0.0
    %362 = vmatprep.subr.mxu0 0.0
    %363 = vmatpush1.msra.mxu0 0.0
    %364 = vmatprep.subr.mxu0 0.0
    %365 = vmatpush1.msra.mxu0 0.0
    %366 = vmatprep.subr.mxu0 0.0
    %367 = vmatpush1.msra.mxu0 0.0
    %368 = vmatprep.subr.mxu0 0.0
    %369 = vmatpush1.msra.mxu0 0.0
    %370 = vmatprep.subr.mxu0 0.0
    %371 = vmatpush1.msra.mxu0 0.0
    %372 = vmatprep.subr.mxu0 0.0
    %373 = vmatpush1.msra.mxu0 0.0
    %374 = vmatprep.subr.mxu0 0.0
    %375 = vmatpush1.msra.mxu0 0.0
    %376 = vmatprep.subr.mxu0 0.0
    %377 = vmatpush1.msra.mxu0 0.0
    %378 = vmatprep.subr.mxu0 0.0
    %379 = vmatpush1.msra.mxu0 0.0
    %380 = vmatprep.subr.mxu0 0.0
    %381 = vmatpush1.msra.mxu0 0.0
    %382 = vmatprep.subr.mxu0 0.0
    %383 = vmatpush1.msra.mxu0 0.0
    %384 = vmatprep.subr.mxu0 0.0
    %385 = vmatpush1.msra.mxu0 0.0
    %386 = vmatprep.subr.mxu0 0.0
    %387 = vmatpush1.msra.mxu0 0.0
    %388 = vmatprep.mubr.f32.mxu0 0.0
    %389 = vmatmul.mubr.f32.gmra.mrb[0].mxu0 %v322
    %v390 = vpop.f32.mrb[0].mxu0
    %v391 = vadd.f32 %v318, %v390
    %v392 = vpop.f32.mrb[0].mxu0
    %393 = vdwg.mxu0
    %v394 = vmax.f32 %v391, 0.0
    %v395 = vld [vmem:[%s6] sm:$0xff]
    %v396 = vld [vmem:[%s6 + $0x8] sm:$0xff]
    %v397 = vld [vmem:[%s6 + $0x10] sm:$0xff]
    %v398 = vld [vmem:[%s6 + $0x18] sm:$0xff]
    %v399 = vld [vmem:[%s6 + $0x20] sm:$0xff]
    %v400 = vld [vmem:[%s6 + $0x28] sm:$0xff]
    %v401 = vld [vmem:[%s6 + $0x30] sm:$0xff]
    %v402 = vld [vmem:[%s6 + $0x38] sm:$0xff]
    %v403 = vld [vmem:[#allocation9] sm:$0x1]
    %v405 = vlaneseq
    %v406 = vshrl.u32 %v405, 7
    %v407 = vsub.s32 0, %v406
    %v408 = vrot.slane %v403, %v407
    %v411 = vsel %vm320, %v394, 0
    %413 = vmatprep.subr.mxu0 0.0
    %414 = vmatpush1.msra.mxu0 %v395
    %415 = vmatprep.subr.mxu0 0.0
    %416 = vmatpush1.msra.mxu0 %v396
    %417 = vmatprep.subr.mxu0 0.0
    %418 = vmatpush1.msra.mxu0 %v397
    %419 = vmatprep.subr.mxu0 0.0
    %420 = vmatpush1.msra.mxu0 %v398
    %421 = vmatprep.subr.mxu0 0.0
    %422 = vmatpush1.msra.mxu0 %v399
    %423 = vmatprep.subr.mxu0 0.0
    %424 = vmatpush1.msra.mxu0 %v400
    %425 = vmatprep.subr.mxu0 0.0
    %426 = vmatpush1.msra.mxu0 %v401
    %427 = vmatprep.subr.mxu0 0.0
    %428 = vmatpush1.msra.mxu0 %v402
    %429 = vmatprep.subr.mxu0 0.0
    %430 = vmatpush1.msra.mxu0 0.0
    %431 = vmatprep.subr.mxu0 0.0
    %432 = vmatpush1.msra.mxu0 0.0
    %433 = vmatprep.subr.mxu0 0.0
    %434 = vmatpush1.msra.mxu0 0.0
    %435 = vmatprep.subr.mxu0 0.0
    %436 = vmatpush1.msra.mxu0 0.0
    %437 = vmatprep.subr.mxu0 0.0
    %438 = vmatpush1.msra.mxu0 0.0
    %439 = vmatprep.subr.mxu0 0.0
    %440 = vmatpush1.msra.mxu0 0.0
    %441 = vmatprep.subr.mxu0 0.0
    %442 = vmatpush1.msra.mxu0 0.0
    %443 = vmatprep.subr.mxu0 0.0
    %444 = vmatpush1.msra.mxu0 0.0
    %445 = vmatprep.subr.mxu0 0.0
    %446 = vmatpush1.msra.mxu0 0.0
    %447 = vmatprep.subr.mxu0 0.0
    %448 = vmatpush1.msra.mxu0 0.0
    %449 = vmatprep.subr.mxu0 0.0
    %450 = vmatpush1.msra.mxu0 0.0
    %451 = vmatprep.subr.mxu0 0.0
    %452 = vmatpush1.msra.mxu0 0.0
    %453 = vmatprep.subr.mxu0 0.0
    %454 = vmatpush1.msra.mxu0 0.0
    %455 = vmatprep.subr.mxu0 0.0
    %456 = vmatpush1.msra.mxu0 0.0
    %457 = vmatprep.subr.mxu0 0.0
    %458 = vmatpush1.msra.mxu0 0.0
    %459 = vmatprep.subr.mxu0 0.0
    %460 = vmatpush1.msra.mxu0 0.0
    %461 = vmatprep.subr.mxu0 0.0
    %462 = vmatpush1.msra.mxu0 0.0
    %463 = vmatprep.subr.mxu0 0.0
    %464 = vmatpush1.msra.mxu0 0.0
    %465 = vmatprep.subr.mxu0 0.0
    %466 = vmatpush1.msra.mxu0 0.0
    %467 = vmatprep.subr.mxu0 0.0
    %468 = vmatpush1.msra.mxu0 0.0
    %469 = vmatprep.subr.mxu0 0.0
    %470 = vmatpush1.msra.mxu0 0.0
    %471 = vmatprep.subr.mxu0 0.0
    %472 = vmatpush1.msra.mxu0 0.0
    %473 = vmatprep.subr.mxu0 0.0
    %474 = vmatpush1.msra.mxu0 0.0
    %475 = vmatprep.subr.mxu0 0.0
    %476 = vmatpush1.msra.mxu0 0.0
    %477 = vmatprep.mubr.f32.mxu0 0.0
    %478 = vmatmul.mubr.f32.gmra.mrb[0].mxu0 %v411
    %v479 = vpop.f32.mrb[0].mxu0
    %v480 = vadd.f32 %v408, %v479
    %v481 = vpop.f32.mrb[0].mxu0
    %482 = vdwg.mxu0
    %v483 = vmax.f32 %v480, 0.0
    %v484 = vld [vmem:[#allocation11] sm:$0xff]
    %v485 = vld [vmem:[#allocation11 + $0x8] sm:$0xff]
    %v486 = vld [vmem:[#allocation11 + $0x10] sm:$0xff]
    %v487 = vld [vmem:[#allocation11 + $0x18] sm:$0xff]
    %v488 = vld [vmem:[#allocation11 + $0x20] sm:$0xff]
    %v489 = vld [vmem:[#allocation11 + $0x28] sm:$0xff]
    %v490 = vld [vmem:[#allocation11 + $0x30] sm:$0xff]
    %v491 = vld [vmem:[#allocation11 + $0x38] sm:$0xff]
    %v492 = vld [vmem:[#allocation12] sm:$0x1]
    %v494 = vlaneseq
    %v495 = vshrl.u32 %v494, 7
    %v496 = vsub.s32 0, %v495
    %v497 = vrot.slane %v492, %v496
    %v500 = vsel %vm320, %v483, 0
    %502 = vmatprep.subr.mxu0 0.0
    %503 = vmatpush1.msra.mxu0 %v484
    %504 = vmatprep.subr.mxu0 0.0
    %505 = vmatpush1.msra.mxu0 %v485
    %506 = vmatprep.subr.mxu0 0.0
    %507 = vmatpush1.msra.mxu0 %v486
    %508 = vmatprep.subr.mxu0 0.0
    %509 = vmatpush1.msra.mxu0 %v487
    %510 = vmatprep.subr.mxu0 0.0
    %511 = vmatpush1.msra.mxu0 %v488
    %512 = vmatprep.subr.mxu0 0.0
    %513 = vmatpush1.msra.mxu0 %v489
    %514 = vmatprep.subr.mxu0 0.0
    %515 = vmatpush1.msra.mxu0 %v490
    %516 = vmatprep.subr.mxu0 0.0
    %517 = vmatpush1.msra.mxu0 %v491
    %518 = vmatprep.subr.mxu0 0.0
    %519 = vmatpush1.msra.mxu0 0.0
    %520 = vmatprep.subr.mxu0 0.0
    %521 = vmatpush1.msra.mxu0 0.0
    %522 = vmatprep.subr.mxu0 0.0
    %523 = vmatpush1.msra.mxu0 0.0
    %524 = vmatprep.subr.mxu0 0.0
    %525 = vmatpush1.msra.mxu0 0.0
    %526 = vmatprep.subr.mxu0 0.0
    %527 = vmatpush1.msra.mxu0 0.0
    %528 = vmatprep.subr.mxu0 0.0
    %529 = vmatpush1.msra.mxu0 0.0
    %530 = vmatprep.subr.mxu0 0.0
    %531 = vmatpush1.msra.mxu0 0.0
    %532 = vmatprep.subr.mxu0 0.0
    %533 = vmatpush1.msra.mxu0 0.0
    %534 = vmatprep.subr.mxu0 0.0
    %535 = vmatpush1.msra.mxu0 0.0
    %536 = vmatprep.subr.mxu0 0.0
    %537 = vmatpush1.msra.mxu0 0.0
    %538 = vmatprep.subr.mxu0 0.0
    %539 = vmatpush1.msra.mxu0 0.0
    %540 = vmatprep.subr.mxu0 0.0
    %541 = vmatpush1.msra.mxu0 0.0
    %542 = vmatprep.subr.mxu0 0.0
    %543 = vmatpush1.msra.mxu0 0.0
    %544 = vmatprep.subr.mxu0 0.0
    %545 = vmatpush1.msra.mxu0 0.0
    %546 = vmatprep.subr.mxu0 0.0
    %547 = vmatpush1.msra.mxu0 0.0
    %548 = vmatprep.subr.mxu0 0.0
    %549 = vmatpush1.msra.mxu0 0.0
    %550 = vmatprep.subr.mxu0 0.0
    %551 = vmatpush1.msra.mxu0 0.0
    %552 = vmatprep.subr.mxu0 0.0
    %553 = vmatpush1.msra.mxu0 0.0
    %554 = vmatprep.subr.mxu0 0.0
    %555 = vmatpush1.msra.mxu0 0.0
    %556 = vmatprep.subr.mxu0 0.0
    %557 = vmatpush1.msra.mxu0 0.0
    %558 = vmatprep.subr.mxu0 0.0
    %559 = vmatpush1.msra.mxu0 0.0
    %560 = vmatprep.subr.mxu0 0.0
    %561 = vmatpush1.msra.mxu0 0.0
    %562 = vmatprep.subr.mxu0 0.0
    %563 = vmatpush1.msra.mxu0 0.0
    %564 = vmatprep.subr.mxu0 0.0
    %565 = vmatpush1.msra.mxu0 0.0
    %566 = vmatprep.mubr.f32.mxu0 0.0
    %567 = vmatmul.mubr.f32.gmra.mrb[0].mxu0 %v500
    %v568 = vpop.f32.mrb[0].mxu0
    %v569 = vadd.f32 %v497, %v568
    %v570 = vpop.f32.mrb[0].mxu0
    %571 = vdwg.mxu0
    %v572 = vmax.f32 %v569, 0.0
    %v573 = vld [vmem:[%s10] sm:$0xff]
    %v574 = vld [vmem:[%s10 + $0x8] sm:$0xff]
    %v575 = vld [vmem:[%s10 + $0x10] sm:$0xff]
    %v576 = vld [vmem:[%s10 + $0x18] sm:$0xff]
    %v577 = vld [vmem:[%s10 + $0x20] sm:$0xff]
    %v578 = vld [vmem:[%s10 + $0x28] sm:$0xff]
    %v579 = vld [vmem:[%s10 + $0x30] sm:$0xff]
    %v580 = vld [vmem:[%s10 + $0x38] sm:$0xff]
    %v581 = vld [vmem:[#allocation14] sm:$0x1]
    %v583 = vlaneseq
    %v584 = vshrl.u32 %v583, 7
    %v585 = vsub.s32 0, %v584
    %v586 = vrot.slane %v581, %v585
    %v589 = vsel %vm320, %v572, 0
    %591 = vmatprep.subr.mxu0 0.0
    %592 = vmatpush1.msra.mxu0 %v573
    %593 = vmatprep.subr.mxu0 0.0
    %594 = vmatpush1.msra.mxu0 %v574
    %595 = vmatprep.subr.mxu0 0.0
    %596 = vmatpush1.msra.mxu0 %v575
    %597 = vmatprep.subr.mxu0 0.0
    %598 = vmatpush1.msra.mxu0 %v576
    %599 = vmatprep.subr.mxu0 0.0
    %600 = vmatpush1.msra.mxu0 %v577
    %601 = vmatprep.subr.mxu0 0.0
    %602 = vmatpush1.msra.mxu0 %v578
    %603 = vmatprep.subr.mxu0 0.0
    %604 = vmatpush1.msra.mxu0 %v579
    %605 = vmatprep.subr.mxu0 0.0
    %606 = vmatpush1.msra.mxu0 %v580
    %607 = vmatprep.subr.mxu0 0.0
    %608 = vmatpush1.msra.mxu0 0.0
    %609 = vmatprep.subr.mxu0 0.0
    %610 = vmatpush1.msra.mxu0 0.0
    %611 = vmatprep.subr.mxu0 0.0
    %612 = vmatpush1.msra.mxu0 0.0
    %613 = vmatprep.subr.mxu0 0.0
    %614 = vmatpush1.msra.mxu0 0.0
    %615 = vmatprep.subr.mxu0 0.0
    %616 = vmatpush1.msra.mxu0 0.0
    %617 = vmatprep.subr.mxu0 0.0
    %618 = vmatpush1.msra.mxu0 0.0
    %619 = vmatprep.subr.mxu0 0.0
    %620 = vmatpush1.msra.mxu0 0.0
    %621 = vmatprep.subr.mxu0 0.0
    %622 = vmatpush1.msra.mxu0 0.0
    %623 = vmatprep.subr.mxu0 0.0
    %624 = vmatpush1.msra.mxu0 0.0
    %625 = vmatprep.subr.mxu0 0.0
    %626 = vmatpush1.msra.mxu0 0.0
    %627 = vmatprep.subr.mxu0 0.0
    %628 = vmatpush1.msra.mxu0 0.0
    %629 = vmatprep.subr.mxu0 0.0
    %630 = vmatpush1.msra.mxu0 0.0
    %631 = vmatprep.subr.mxu0 0.0
    %632 = vmatpush1.msra.mxu0 0.0
    %633 = vmatprep.subr.mxu0 0.0
    %634 = vmatpush1.msra.mxu0 0.0
    %635 = vmatprep.subr.mxu0 0.0
    %636 = vmatpush1.msra.mxu0 0.0
    %637 = vmatprep.subr.mxu0 0.0
    %638 = vmatpush1.msra.mxu0 0.0
    %639 = vmatprep.subr.mxu0 0.0
    %640 = vmatpush1.msra.mxu0 0.0
    %641 = vmatprep.subr.mxu0 0.0
    %642 = vmatpush1.msra.mxu0 0.0
    %643 = vmatprep.subr.mxu0 0.0
    %644 = vmatpush1.msra.mxu0 0.0
    %645 = vmatprep.subr.mxu0 0.0
    %646 = vmatpush1.msra.mxu0 0.0
    %647 = vmatprep.subr.mxu0 0.0
    %648 = vmatpush1.msra.mxu0 0.0
    %649 = vmatprep.subr.mxu0 0.0
    %650 = vmatpush1.msra.mxu0 0.0
    %651 = vmatprep.subr.mxu0 0.0
    %652 = vmatpush1.msra.mxu0 0.0
    %653 = vmatprep.subr.mxu0 0.0
    %654 = vmatpush1.msra.mxu0 0.0
    %655 = vmatprep.mubr.f32.mxu0 0.0
    %656 = vmatmul.mubr.f32.gmra.mrb[0].mxu0 %v589
    %v657 = vpop.f32.mrb[0].mxu0
    %v658 = vadd.f32 %v586, %v657
    %v659 = vpop.f32.mrb[0].mxu0
    %660 = vdwg.mxu0
    %v661 = vmax.f32 %v658, 0.0
    %v662 = vld [vmem:[#allocation2] sm:$0xff]
    %v663 = vld [vmem:[#allocation15] sm:$0xff]
    %v664 = vld [vmem:[#allocation15 + $0x8] sm:$0xff]
    %v665 = vld [vmem:[#allocation15 + $0x10] sm:$0xff]
    %v666 = vld [vmem:[#allocation15 + $0x18] sm:$0xff]
    %v667 = vld [vmem:[#allocation17] sm:$0xff]
    %v668 = vld [vmem:[#allocation17 + $0x8] sm:$0xff]
    %v669 = vld [vmem:[#allocation17 + $0x10] sm:$0xff]
    %v670 = vld [vmem:[#allocation17 + $0x18] sm:$0xff]
    %vm671 = vcmask 261120
    %v673 = vsel %vm671, %v662, 0
    %675 = vmatprep.subr.mxu0 0.0
    %676 = vmatpush1.msra.mxu0 %v667
    %677 = vmatprep.subr.mxu0 0.0
    %678 = vmatpush1.msra.mxu0 %v668
    %679 = vmatprep.subr.mxu0 0.0
    %680 = vmatpush1.msra.mxu0 %v669
    %681 = vmatprep.subr.mxu0 0.0
    %682 = vmatpush1.msra.mxu0 %v670
    %683 = vmatprep.subr.mxu0 0.0
    %684 = vmatpush1.msra.mxu0 0.0
    %685 = vmatprep.subr.mxu0 0.0
    %686 = vmatpush1.msra.mxu0 0.0
    %687 = vmatprep.subr.mxu0 0.0
    %688 = vmatpush1.msra.mxu0 0.0
    %689 = vmatprep.subr.mxu0 0.0
    %690 = vmatpush1.msra.mxu0 0.0
    %691 = vmatprep.subr.mxu0 0.0
    %692 = vmatpush1.msra.mxu0 0.0
    %693 = vmatprep.subr.mxu0 0.0
    %694 = vmatpush1.msra.mxu0 0.0
    %695 = vmatprep.subr.mxu0 0.0
    %696 = vmatpush1.msra.mxu0 0.0
    %697 = vmatprep.subr.mxu0 0.0
    %698 = vmatpush1.msra.mxu0 0.0
    %699 = vmatprep.subr.mxu0 0.0
    %700 = vmatpush1.msra.mxu0 0.0
    %701 = vmatprep.subr.mxu0 0.0
    %702 = vmatpush1.msra.mxu0 0.0
    %703 = vmatprep.subr.mxu0 0.0
    %704 = vmatpush1.msra.mxu0 0.0
    %705 = vmatprep.subr.mxu0 0.0
    %706 = vmatpush1.msra.mxu0 0.0
    %707 = vmatprep.subr.mxu0 0.0
    %708 = vmatpush1.msra.mxu0 0.0
    %709 = vmatprep.subr.mxu0 0.0
    %710 = vmatpush1.msra.mxu0 0.0
    %711 = vmatprep.subr.mxu0 0.0
    %712 = vmatpush1.msra.mxu0 0.0
    %713 = vmatprep.subr.mxu0 0.0
    %714 = vmatpush1.msra.mxu0 0.0
    %715 = vmatprep.subr.mxu0 0.0
    %716 = vmatpush1.msra.mxu0 0.0
    %717 = vmatprep.subr.mxu0 0.0
    %718 = vmatpush1.msra.mxu0 0.0
    %719 = vmatprep.subr.mxu0 0.0
    %720 = vmatpush1.msra.mxu0 0.0
    %721 = vmatprep.subr.mxu0 0.0
    %722 = vmatpush1.msra.mxu0 0.0
    %723 = vmatprep.subr.mxu0 0.0
    %724 = vmatpush1.msra.mxu0 0.0
    %725 = vmatprep.subr.mxu0 0.0
    %726 = vmatpush1.msra.mxu0 0.0
    %727 = vmatprep.subr.mxu0 0.0
    %728 = vmatpush1.msra.mxu0 0.0
    %729 = vmatprep.subr.mxu0 0.0
    %730 = vmatpush1.msra.mxu0 0.0
    %731 = vmatprep.subr.mxu0 0.0
    %732 = vmatpush1.msra.mxu0 0.0
    %733 = vmatprep.subr.mxu0 0.0
    %734 = vmatpush1.msra.mxu0 0.0
    %735 = vmatprep.subr.mxu0 0.0
    %736 = vmatpush1.msra.mxu0 0.0
    %737 = vmatprep.subr.mxu0 0.0
    %738 = vmatpush1.msra.mxu0 0.0
    %739 = vmatprep.mubr.f32.mxu0 0.0
    %740 = vmatmul.mubr.f32.gmra.mrb[0].mxu0 %v673
    %v741 = vpop.f32.mrb[0].mxu0
    %v742 = vadd.f32 0.0, %v741
    %v743 = vpop.f32.mrb[0].mxu0
    %744 = vdwg.mxu0
    %v746 = vsel %vm671, %v661, 0
    %748 = vmatprep.subr.mxu0 0.0
    %749 = vmatpush1.msra.mxu0 %v663
    %750 = vmatprep.subr.mxu0 0.0
    %751 = vmatpush1.msra.mxu0 %v664
    %752 = vmatprep.subr.mxu0 0.0
    %753 = vmatpush1.msra.mxu0 %v665
    %754 = vmatprep.subr.mxu0 0.0
    %755 = vmatpush1.msra.mxu0 %v666
    %756 = vmatprep.subr.mxu0 0.0
    %757 = vmatpush1.msra.mxu0 0.0
    %758 = vmatprep.subr.mxu0 0.0
    %759 = vmatpush1.msra.mxu0 0.0
    %760 = vmatprep.subr.mxu0 0.0
    %761 = vmatpush1.msra.mxu0 0.0
    %762 = vmatprep.subr.mxu0 0.0
    %763 = vmatpush1.msra.mxu0 0.0
    %764 = vmatprep.subr.mxu0 0.0
    %765 = vmatpush1.msra.mxu0 0.0
    %766 = vmatprep.subr.mxu0 0.0
    %767 = vmatpush1.msra.mxu0 0.0
    %768 = vmatprep.subr.mxu0 0.0
    %769 = vmatpush1.msra.mxu0 0.0
    %770 = vmatprep.subr.mxu0 0.0
    %771 = vmatpush1.msra.mxu0 0.0
    %772 = vmatprep.subr.mxu0 0.0
    %773 = vmatpush1.msra.mxu0 0.0
    %774 = vmatprep.subr.mxu0 0.0
    %775 = vmatpush1.msra.mxu0 0.0
    %776 = vmatprep.subr.mxu0 0.0
    %777 = vmatpush1.msra.mxu0 0.0
    %778 = vmatprep.subr.mxu0 0.0
    %779 = vmatpush1.msra.mxu0 0.0
    %780 = vmatprep.subr.mxu0 0.0
    %781 = vmatpush1.msra.mxu0 0.0
    %782 = vmatprep.subr.mxu0 0.0
    %783 = vmatpush1.msra.mxu0 0.0
    %784 = vmatprep.subr.mxu0 0.0
    %785 = vmatpush1.msra.mxu0 0.0
    %786 = vmatprep.subr.mxu0 0.0
    %787 = vmatpush1.msra.mxu0 0.0
    %788 = vmatprep.subr.mxu0 0.0
    %789 = vmatpush1.msra.mxu0 0.0
    %790 = vmatprep.subr.mxu0 0.0
    %791 = vmatpush1.msra.mxu0 0.0
    %792 = vmatprep.subr.mxu0 0.0
    %793 = vmatpush1.msra.mxu0 0.0
    %794 = vmatprep.subr.mxu0 0.0
    %795 = vmatpush1.msra.mxu0 0.0
    %796 = vmatprep.subr.mxu0 0.0
    %797 = vmatpush1.msra.mxu0 0.0
    %798 = vmatprep.subr.mxu0 0.0
    %799 = vmatpush1.msra.mxu0 0.0
    %800 = vmatprep.subr.mxu0 0.0
    %801 = vmatpush1.msra.mxu0 0.0
    %802 = vmatprep.subr.mxu0 0.0
    %803 = vmatpush1.msra.mxu0 0.0
    %804 = vmatprep.subr.mxu0 0.0
    %805 = vmatpush1.msra.mxu0 0.0
    %806 = vmatprep.subr.mxu0 0.0
    %807 = vmatpush1.msra.mxu0 0.0
    %808 = vmatprep.subr.mxu0 0.0
    %809 = vmatpush1.msra.mxu0 0.0
    %810 = vmatprep.subr.mxu0 0.0
    %811 = vmatpush1.msra.mxu0 0.0
    %812 = vmatprep.mubr.f32.mxu0 0.0
    %813 = vmatmul.mubr.f32.gmra.mrb[0].mxu0 %v746
    %v814 = vpop.f32.mrb[0].mxu0
    %v815 = vadd.f32 %v742, %v814
    %v816 = vpop.f32.mrb[0].mxu0
    %817 = vdwg.mxu0
    %v818 = vld [vmem:[#allocation18] sm:$0x1]
    %v820 = vlaneseq
    %v821 = vshrl.u32 %v820, 7
    %v822 = vsub.s32 0, %v821
    %v823 = vrot.slane %v818, %v822
    %v825 = vadd.f32 %v815, %v823
    %v826 = vxor.u32 %v825, 2147483648
    %v827 = vmul.f32 %v826, 1.442695
    %v828 = vpow.pop %v827
    %v829 = vadd.f32 %v828, 1.0
    %v830 = vrcp.pop %v829
    %v831 = vmul.f32 1.0, %v830
    %833 = vrot.lane.b32.xlu0 %v825, 32
    %v834 = vpop.permute.xlu0 %833
    %v836 = vmul.f32 %v831, %v834
    %838 = vrot.lane.b32.xlu0 %v836, 64
    %v839 = vpop.permute.xlu0 %838
    %v841 = vadd.f32 %v825, %v839
    %v842 = vtanh.pop %v841
    %844 = vrot.lane.b32.xlu0 %v842, 64
    %v845 = vpop.permute.xlu0 %844
    %v847 = vsub.f32 %v662, %v845
    %849 = vrot.lane.b32.xlu0 %v847, 32
    %v850 = vpop.permute.xlu0 %849
    %v852 = vmul.f32 %v831, %v850
    %854 = vrot.lane.b32.xlu0 %v852, 32
    %v855 = vpop.permute.xlu0 %854
    %v857 = vadd.f32 %v842, %v855
    %859 = vrot.lane.b32.xlu0 %v857, 64
    %v860 = vpop.permute.xlu0 %859
    %862 = vst.msk [vmem:[#allocation2] sm:$0xff] %vm671, %v860
    %863 = vst.msk [vmem:[#allocation24] sm:$0xff] %vm671, %v860
    %v864 = vld [vmem:[#allocation20] sm:$0xff]
    %v865 = vld [vmem:[#allocation20 + $0x8] sm:$0xff]
    %v866 = vld [vmem:[#allocation20 + $0x10] sm:$0xff]
    %v867 = vld [vmem:[#allocation20 + $0x18] sm:$0xff]
    %v868 = vld [vmem:[#allocation21] sm:$0x1]
    %v870 = vlaneseq
    %v871 = vshrl.u32 %v870, 7
    %v872 = vsub.s32 0, %v871
    %v873 = vrot.slane %v868, %v872
    %v875 = vsel %vm671, %v860, 0
    %877 = vmatprep.subr.mxu0 0.0
    %878 = vmatpush1.msra.mxu0 %v864
    %879 = vmatprep.subr.mxu0 0.0
    %880 = vmatpush1.msra.mxu0 %v865
    %881 = vmatprep.subr.mxu0 0.0
    %882 = vmatpush1.msra.mxu0 %v866
    %883 = vmatprep.subr.mxu0 0.0
    %884 = vmatpush1.msra.mxu0 %v867
    %885 = vmatprep.subr.mxu0 0.0
    %886 = vmatpush1.msra.mxu0 0.0
    %887 = vmatprep.subr.mxu0 0.0
    %888 = vmatpush1.msra.mxu0 0.0
    %889 = vmatprep.subr.mxu0 0.0
    %890 = vmatpush1.msra.mxu0 0.0
    %891 = vmatprep.subr.mxu0 0.0
    %892 = vmatpush1.msra.mxu0 0.0
    %893 = vmatprep.subr.mxu0 0.0
    %894 = vmatpush1.msra.mxu0 0.0
    %895 = vmatprep.subr.mxu0 0.0
    %896 = vmatpush1.msra.mxu0 0.0
    %897 = vmatprep.subr.mxu0 0.0
    %898 = vmatpush1.msra.mxu0 0.0
    %899 = vmatprep.subr.mxu0 0.0
    %900 = vmatpush1.msra.mxu0 0.0
    %901 = vmatprep.subr.mxu0 0.0
    %902 = vmatpush1.msra.mxu0 0.0
    %903 = vmatprep.subr.mxu0 0.0
    %904 = vmatpush1.msra.mxu0 0.0
    %905 = vmatprep.subr.mxu0 0.0
    %906 = vmatpush1.msra.mxu0 0.0
    %907 = vmatprep.subr.mxu0 0.0
    %908 = vmatpush1.msra.mxu0 0.0
    %909 = vmatprep.subr.mxu0 0.0
    %910 = vmatpush1.msra.mxu0 0.0
    %911 = vmatprep.subr.mxu0 0.0
    %912 = vmatpush1.msra.mxu0 0.0
    %913 = vmatprep.subr.mxu0 0.0
    %914 = vmatpush1.msra.mxu0 0.0
    %915 = vmatprep.subr.mxu0 0.0
    %916 = vmatpush1.msra.mxu0 0.0
    %917 = vmatprep.subr.mxu0 0.0
    %918 = vmatpush1.msra.mxu0 0.0
    %919 = vmatprep.subr.mxu0 0.0
    %920 = vmatpush1.msra.mxu0 0.0
    %921 = vmatprep.subr.mxu0 0.0
    %922 = vmatpush1.msra.mxu0 0.0
    %923 = vmatprep.subr.mxu0 0.0
    %924 = vmatpush1.msra.mxu0 0.0
    %925 = vmatprep.subr.mxu0 0.0
    %926 = vmatpush1.msra.mxu0 0.0
    %927 = vmatprep.subr.mxu0 0.0
    %928 = vmatpush1.msra.mxu0 0.0
    %929 = vmatprep.subr.mxu0 0.0
    %930 = vmatpush1.msra.mxu0 0.0
    %931 = vmatprep.subr.mxu0 0.0
    %932 = vmatpush1.msra.mxu0 0.0
    %933 = vmatprep.subr.mxu0 0.0
    %934 = vmatpush1.msra.mxu0 0.0
    %935 = vmatprep.subr.mxu0 0.0
    %936 = vmatpush1.msra.mxu0 0.0
    %937 = vmatprep.subr.mxu0 0.0
    %938 = vmatpush1.msra.mxu0 0.0
    %939 = vmatprep.subr.mxu0 0.0
    %940 = vmatpush1.msra.mxu0 0.0
    %941 = vmatprep.mubr.f32.mxu0 0.0
    %942 = vmatmul.mubr.f32.gmra.mrb[0].mxu0 %v875
    %v943 = vpop.f32.mrb[0].mxu0
    %v944 = vadd.f32 %v873, %v943
    %v945 = vpop.f32.mrb[0].mxu0
    %946 = vdwg.mxu0
    %947 = vst [vmem:[#allocation23] sm:$0xff] %v944
    // Predicated region
    $region122: #{rnn_agent_rollout.1} parent=1 // pred_check
      _
    $region123: #{rnn_agent_rollout.1} parent=1 // pred_check_branch
      %949 = sbr.rel (0) target = $region125
    $region124: #{rnn_agent_rollout.1} parent=1 // pred_region
      %s951 = ssub.s32 128, 128
      %952 = vsyncadd [#allocation5], %s951
      %s954 = sshll.u32 [#allocation23], 4
      %s955 = int_to_ptr.vmem [resolvable:$true] %s954
      %957 = dma.vmem_to_hbm [thread:$0]  %s955, 128, %s17, [#allocation5]
    $region125: #{rnn_agent_rollout.1} parent=1 // pred_fallthru
      _
    // Predicated region
    $region126: #{rnn_agent_rollout.1} parent=1 // pred_check
      _
    $region127: #{rnn_agent_rollout.1} parent=1 // pred_check_branch
      %959 = sbr.rel (0) target = $region129
    $region128: #{rnn_agent_rollout.1} parent=1 // pred_region
      %s961 = ssub.s32 128, 128
      %962 = vsyncadd [#allocation25], %s961
      %s964 = sshll.u32 [#allocation24], 4
      %s965 = int_to_ptr.vmem [resolvable:$true] %s964
      %967 = dma.vmem_to_hbm [thread:$0]  %s965, 128, %s18, [#allocation25]
    $region129: #{rnn_agent_rollout.1} parent=1 // pred_fallthru
      _
    // Predicated region
    $region130: #{rnn_agent_rollout.1} parent=1 // pred_check
      _
    $region131: #{rnn_agent_rollout.1} parent=1 // pred_check_branch
      %969 = sbr.rel (0) target = $region133
    $region132: #{rnn_agent_rollout.1} parent=1 // pred_region
      %970 = dma.done [#allocation5], 128
    $region133: #{rnn_agent_rollout.1} parent=1 // pred_fallthru
      _
    // Predicated region
    $region134: #{rnn_agent_rollout.1} parent=1 // pred_check
      _
    $region135: #{rnn_agent_rollout.1} parent=1 // pred_check_branch
      %972 = sbr.rel (0) target = $region137
    $region136: #{rnn_agent_rollout.1} parent=1 // pred_region
      %973 = dma.done [#allocation25], 128
    $region137: #{rnn_agent_rollout.1} parent=1 // pred_fallthru
      _
    %974 = vsyncpa [#allocation4], 1
    %975 = vsyncpa [#allocation7], 1
    %976 = vsyncpa [#allocation10], 1
    %977 = vsyncpa [#allocation13], 1
    %978 = vsyncpa [#allocation16], 1
    %979 = vsyncpa [#allocation19], 1
    %980 = vsyncpa [#allocation22], 1
    %981 = vsyncpa [#allocation5], 1
    %982 = vsyncpa [#allocation25], 1

</llo_original>
